<compile_context>
chip_gen: v7x
topology: tpu7x:2x2x1
jax: 0.10.0
libtpu: 0.0.40
codegen_flags: <defaults>
</compile_context>

<pallas_src>
import functools

import jax
import jax.numpy as jnp
from jax.experimental import pallas as pl
from jax.experimental.pallas import tpu as pltpu


def attention_kernel(x_ref, wqkv_ref, wout_ref, g_ref, beta_ref, o_ref,
                     *, bt, n, heads, dim_head, scale, eps):
    dh = dim_head

    # ---- LayerNorm over channel dim (fp32 stats, biased variance, eps inside sqrt:
    #      matches torch.nn.LayerNorm(dim)) ----
    x = x_ref[...].astype(jnp.float32)                       # (bt*n, D)
    mean = jnp.mean(x, axis=-1, keepdims=True)
    var = jnp.mean((x - mean) ** 2, axis=-1, keepdims=True)
    xn = (x - mean) * jax.lax.rsqrt(var + eps)
    xn = xn * g_ref[...].astype(jnp.float32) + beta_ref[...].astype(jnp.float32)

    # ---- Fused QKV projection (weights in native dtype, f32 accumulation).
    #      W_qkv columns are head-contiguous: [q_h | k_h | v_h] per head. ----
    w_qkv = wqkv_ref[...]                                    # (D, 3*inner)
    w_out = wout_ref[...]                                    # (inner, D)
    qkv = jnp.dot(xn.astype(w_qkv.dtype), w_qkv,
                  preferred_element_type=jnp.float32)        # (bt*n, 3*inner)

    def one_batch(qkv_b):
        """qkv_b: (n, 3*inner) f32 -> (n, D) f32 (attention + output projection)."""
        o_b = jnp.zeros((n, w_out.shape[-1]), jnp.float32)
        for h in range(heads):                               # heads is small & static
            base = h * 3 * dh
            q = qkv_b[:, base:base + dh] * scale             # scale folded into q
            k = qkv_b[:, base + dh:base + 2 * dh]
            v = qkv_b[:, base + 2 * dh:base + 3 * dh]

            # q @ k^T without materializing a transpose: contract both on dh.
            dots = jax.lax.dot_general(
                q, k, (((1,), (1,)), ((), ())),
                preferred_element_type=jnp.float32)          # (n, n)
            dots = dots - jnp.max(dots, axis=-1, keepdims=True)
            e = jnp.exp(dots)
            attn = e / jnp.sum(e, axis=-1, keepdims=True)    # exact softmax

            out_h = jnp.dot(attn.astype(v.dtype), v,
                            preferred_element_type=jnp.float32)   # (n, dh)
            w_out_h = w_out[h * dh:(h + 1) * dh, :]               # (dh, D)
            o_b = o_b + jnp.dot(out_h.astype(w_out_h.dtype), w_out_h,
                                preferred_element_type=jnp.float32)
        return o_b

    if bt <= 8:
        # Small batch-tile: static Python unroll, static row slices.
        for b in range(bt):
            r0 = b * n
            o_ref[r0:r0 + n, :] = one_batch(qkv[r0:r0 + n, :]).astype(o_ref.dtype)
    else:
        # Large batch-tile: bounded live ranges via fori_loop, dynamic row slices.
        def body(b, carry):
            r0 = b * n
            if n % 8 == 0:
                r0 = pl.multiple_of(r0, 8)
            qkv_b = jax.lax.dynamic_slice_in_dim(qkv, r0, n, axis=0)
            o_ref[pl.ds(r0, n), :] = one_batch(qkv_b).astype(o_ref.dtype)
            return carry
        jax.lax.fori_loop(0, bt, body, 0, unroll=2)


def _pick_batch_tile(B, N, target_rows=512):
    """Pick batch elements per grid step.

    Tiny problems run in a single grid step; otherwise pick the largest divisor of B
    whose row count (bt*N) is <= target_rows and a multiple of 8 (BlockSpec rule).
    """
    if B * N <= target_rows:
        return B
    best = None
    for d in range(1, B + 1):
        if B % d:
            continue
        rows = d * N
        if rows % 8:
            continue
        if rows <= target_rows:
            best = d
    if best is not None:
        return best
    # No divisor gives 8-divisible rows below the target: take the smallest that is
    # 8-divisible, otherwise fall back to the whole batch (full-array block is legal).
    for d in range(1, B + 1):
        if B % d == 0 and (d * N) % 8 == 0:
            return d
    return B


def _vmem_limit_bytes(rows, D, inner, n, itemsize, w_bytes, single_buffer_weights):
    """Chip-aware VMEM limit with headroom."""
    try:
        capacity = int(getattr(pltpu.get_tpu_info(), "vmem_capacity_bytes"))
    except Exception:
        capacity = 64 << 20                      # conservative (v7x per-TC)
    cap = max(16 << 20, capacity // 2)           # ~32 MiB on v7x, ~64 MiB on v5e/v6e

    w_mult = 1 if single_buffer_weights else 2
    bytes_w = w_mult * w_bytes
    bytes_io = 4 * rows * D * itemsize           # 2x in + 2x out buffers
    bytes_tmp = rows * (3 * inner + D) * 4 + n * n * 4
    est = 4 * (bytes_w + bytes_io + bytes_tmp)   # 4x headroom
    return int(min(cap, max(16 << 20, est)))


def attention_block(x, w_qkv, w_out, gamma, beta, *, heads, dim_head):
    """x: (B, N, D); w_qkv: (D, 3*heads*dim_head); w_out: (heads*dim_head, D);
    gamma, beta: (1, D). Returns (B, N, D)."""
    B, N, D = x.shape
    inner = heads * dim_head
    scale = dim_head ** -0.5

    bt = _pick_batch_tile(B, N)
    rows = bt * N
    grid = B // bt

    # Re-layout W_qkv columns head-contiguously: per head h -> [q_h | k_h | v_h].
    perm = []
    for h in range(heads):
        perm += list(range(h * dim_head, (h + 1) * dim_head))
        perm += list(range(inner + h * dim_head, inner + (h + 1) * dim_head))
        perm += list(range(2 * inner + h * dim_head, 2 * inner + (h + 1) * dim_head))
    w_qkv_hc = w_qkv[:, jnp.array(perm, dtype=jnp.int32)]

    x2 = x.reshape(B * N, D)

    kernel = functools.partial(attention_kernel, bt=bt, n=N, heads=heads,
                               dim_head=dim_head, scale=scale, eps=1e-5)

    # Invariant operands: single-buffer them only when there is an actual pipeline.
    use_buffered = grid > 1

    def _const_spec(shape):
        idx_map = lambda i: tuple(0 for _ in shape)
        if use_buffered:
            return pl.BlockSpec(shape, idx_map, pipeline_mode=pl.Buffered(1))
        return pl.BlockSpec(shape, idx_map)

    w_bytes = (w_qkv_hc.size * w_qkv_hc.dtype.itemsize +
               w_out.size * w_out.dtype.itemsize +
               gamma.size * gamma.dtype.itemsize +
               beta.size * beta.dtype.itemsize)
    vmem_limit = _vmem_limit_bytes(rows, D, inner, N, x.dtype.itemsize,
                                   w_bytes, use_buffered)

    out2 = pl.pallas_call(
        kernel,
        out_shape=jax.ShapeDtypeStruct((B * N, D), x.dtype),
        grid_spec=pltpu.PrefetchScalarGridSpec(
            num_scalar_prefetch=0,
            grid=(grid,),
            in_specs=[
                pl.BlockSpec((rows, D), lambda i: (i, 0)),   # x rows block
                _const_spec((D, 3 * inner)),                 # W_qkv (head-contiguous)
                _const_spec((inner, D)),                     # W_out
                _const_spec((1, D)),                         # LN gamma
                _const_spec((1, D)),                         # LN beta
            ],
            out_specs=pl.BlockSpec((rows, D), lambda i: (i, 0)),
        ),
        compiler_params=pltpu.CompilerParams(
            dimension_semantics=("parallel",),
            vmem_limit_bytes=vmem_limit),
    )(x2, w_qkv_hc, w_out, gamma, beta)

    return out2.reshape(B, N, D)


def reference(x, w_qkv, w_out, gamma, beta, *, heads, dim_head):
    # pure-JAX reference mirroring the PyTorch forward
    B, N, D = x.shape
    inner = heads * dim_head
    mean = jnp.mean(x, axis=-1, keepdims=True)
    var = jnp.mean((x - mean) ** 2, axis=-1, keepdims=True)
    xn = (x - mean) / jnp.sqrt(var + 1e-5) * gamma[0] + beta[0]
    qkv = xn @ w_qkv                                        # (B, N, 3*inner)
    q, k, v = jnp.split(qkv, 3, axis=-1)

    def to_heads(t):
        return t.reshape(B, N, heads, dim_head).transpose(0, 2, 1, 3)  # (B, H, N, dh)

    q, k, v = map(to_heads, (q, k, v))
    dots = jnp.einsum('bhqd,bhkd->bhqk', q, k) * (dim_head ** -0.5)
    attn = jax.nn.softmax(dots, axis=-1)
    out = jnp.einsum('bhqk,bhkd->bhqd', attn, v)
    out = out.transpose(0, 2, 1, 3).reshape(B, N, inner)
    return out @ w_out


if __name__ == "__main__":
    # small shapes consistent with the module: dim=32, heads=4, dim_head=16
    B, N, D = 2, 8, 32
    HEADS, DIM_HEAD = 4, 16
    INNER = HEADS * DIM_HEAD

    key = jax.random.PRNGKey(0)
    kx, kq, ko, kg, kb = jax.random.split(key, 5)

    x = jax.random.normal(kx, (B, N, D), dtype=jnp.float32)
    # deterministic parameter init (synthetic; nn.Linear has no bias in this module)
    w_qkv = jax.random.normal(kq, (D, 3 * INNER), dtype=jnp.float32) * (D ** -0.5)
    w_out = jax.random.normal(ko, (INNER, D), dtype=jnp.float32) * (INNER ** -0.5)
    gamma = 1.0 + 0.1 * jax.random.normal(kg, (1, D), dtype=jnp.float32)
    beta = 0.1 * jax.random.normal(kb, (1, D), dtype=jnp.float32)

    out = attention_block(x, w_qkv, w_out, gamma, beta, heads=HEADS, dim_head=DIM_HEAD)
    out = jax.block_until_ready(out)

    ref = reference(x, w_qkv, w_out, gamma, beta, heads=HEADS, dim_head=DIM_HEAD)
    assert out.shape == (B, N, D)
    assert jnp.allclose(out, ref, atol=2e-4, rtol=2e-4), "mismatch vs reference"
    print("KERNEL_OK")
</pallas_src>

<mosaic_0001>
module attributes {stable_mosaic.version = 11 : i64} {
  func.func @attention_kernel(%arg0: i32, %arg1: memref<16x32xf32, #tpu.memory_space<vmem>>, %arg2: memref<32x192xf32, #tpu.memory_space<vmem>>, %arg3: memref<64x32xf32, #tpu.memory_space<vmem>>, %arg4: memref<1x32xf32, #tpu.memory_space<vmem>>, %arg5: memref<1x32xf32, #tpu.memory_space<vmem>>, %arg6: memref<16x32xf32, #tpu.memory_space<vmem>>) attributes {dimension_semantics = [#tpu.dimension_semantics<parallel>], iteration_bounds = array<i64: 1>, scalar_prefetch = 0 : i64, scratch_operands = 0 : i64, tpu.core_type = #tpu.core_type<tc>, window_params = [{transform_indices = @transform_0, window_bounds = array<i64: 16, 32>}, {pipeline_mode = #tpu.pipeline_mode<synchronous>, transform_indices = @transform_1, window_bounds = array<i64: 32, 192>}, {pipeline_mode = #tpu.pipeline_mode<synchronous>, transform_indices = @transform_2, window_bounds = array<i64: 64, 32>}, {pipeline_mode = #tpu.pipeline_mode<synchronous>, transform_indices = @transform_3, window_bounds = array<i64: 1, 32>}, {pipeline_mode = #tpu.pipeline_mode<synchronous>, transform_indices = @transform_4, window_bounds = array<i64: 1, 32>}, {transform_indices = @transform_5, window_bounds = array<i64: 16, 32>}]} {
    %c0 = arith.constant 0 : index
    %c0_0 = arith.constant 0 : index
    %0 = vector.load %arg1[%c0, %c0_0] : memref<16x32xf32, #tpu.memory_space<vmem>>, vector<16x32xf32>
    %cst = arith.constant dense<0.000000e+00> : vector<16xf32>
    %1 = vector.multi_reduction <add>, %0, %cst [1] : vector<16x32xf32> to vector<16xf32>
    %2 = vector.shape_cast %1 : vector<16xf32> to vector<16x1xf32>
    %cst_1 = arith.constant 3.200000e+01 : f32
    %3 = vector.broadcast %cst_1 : f32 to vector<16x1xf32>
    %4 = arith.divf %2, %3 : vector<16x1xf32>
    %5 = vector.broadcast %4 : vector<16x1xf32> to vector<16x32xf32>
    %6 = arith.subf %0, %5 : vector<16x32xf32>
    %7 = arith.mulf %6, %6 : vector<16x32xf32>
    %cst_2 = arith.constant dense<0.000000e+00> : vector<16xf32>
    %8 = vector.multi_reduction <add>, %7, %cst_2 [1] : vector<16x32xf32> to vector<16xf32>
    %9 = vector.shape_cast %8 : vector<16xf32> to vector<16x1xf32>
    %cst_3 = arith.constant 3.200000e+01 : f32
    %10 = vector.broadcast %cst_3 : f32 to vector<16x1xf32>
    %11 = arith.divf %9, %10 : vector<16x1xf32>
    %12 = vector.broadcast %4 : vector<16x1xf32> to vector<16x32xf32>
    %13 = arith.subf %0, %12 : vector<16x32xf32>
    %cst_4 = arith.constant 9.99999974E-6 : f32
    %14 = vector.broadcast %cst_4 : f32 to vector<16x1xf32>
    %15 = arith.addf %11, %14 : vector<16x1xf32>
    %16 = math.rsqrt %15 : vector<16x1xf32>
    %17 = vector.broadcast %16 : vector<16x1xf32> to vector<16x32xf32>
    %18 = arith.mulf %13, %17 : vector<16x32xf32>
    %c0_5 = arith.constant 0 : index
    %c0_6 = arith.constant 0 : index
    %19 = vector.load %arg4[%c0_5, %c0_6] : memref<1x32xf32, #tpu.memory_space<vmem>>, vector<1x32xf32>
    %20 = vector.broadcast %19 : vector<1x32xf32> to vector<16x32xf32>
    %21 = arith.mulf %18, %20 : vector<16x32xf32>
    %c0_7 = arith.constant 0 : index
    %c0_8 = arith.constant 0 : index
    %22 = vector.load %arg5[%c0_7, %c0_8] : memref<1x32xf32, #tpu.memory_space<vmem>>, vector<1x32xf32>
    %23 = vector.broadcast %22 : vector<1x32xf32> to vector<16x32xf32>
    %24 = arith.addf %21, %23 : vector<16x32xf32>
    %c0_9 = arith.constant 0 : index
    %c0_10 = arith.constant 0 : index
    %25 = vector.load %arg2[%c0_9, %c0_10] : memref<32x192xf32, #tpu.memory_space<vmem>>, vector<32x192xf32>
    %c0_11 = arith.constant 0 : index
    %c0_12 = arith.constant 0 : index
    %26 = vector.load %arg3[%c0_11, %c0_12] : memref<64x32xf32, #tpu.memory_space<vmem>>, vector<64x32xf32>
    %cst_13 = arith.constant dense<0.000000e+00> : vector<16x192xf32>
    %27 = tpu.matmul %24, %25, %cst_13 {dimension_numbers = #tpu.dot_dimension_numbers<[1], [0], [0], [1], [0, 0, 1, 1], [], []>} : vector<16x32xf32>, vector<32x192xf32>, vector<16x192xf32> -> vector<16x192xf32>
    %28 = vector.extract_strided_slice %27 {offsets = [0, 0], sizes = [8, 192], strides = [1, 1]} : vector<16x192xf32> to vector<8x192xf32>
    %cst_14 = arith.constant 0.000000e+00 : f32
    %29 = vector.broadcast %cst_14 : f32 to vector<8x32xf32>
    %30 = vector.extract_strided_slice %28 {offsets = [0, 0], sizes = [8, 16], strides = [1, 1]} : vector<8x192xf32> to vector<8x16xf32>
    %cst_15 = arith.constant 2.500000e-01 : f32
    %31 = vector.broadcast %cst_15 : f32 to vector<8x16xf32>
    %32 = arith.mulf %30, %31 : vector<8x16xf32>
    %33 = vector.extract_strided_slice %28 {offsets = [0, 16], sizes = [8, 16], strides = [1, 1]} : vector<8x192xf32> to vector<8x16xf32>
    %34 = vector.extract_strided_slice %28 {offsets = [0, 32], sizes = [8, 16], strides = [1, 1]} : vector<8x192xf32> to vector<8x16xf32>
    %cst_16 = arith.constant dense<0.000000e+00> : vector<8x8xf32>
    %35 = tpu.matmul %32, %33, %cst_16 {dimension_numbers = #tpu.dot_dimension_numbers<[1], [1], [0], [0], [0, 0, 1, 0], [], []>} : vector<8x16xf32>, vector<8x16xf32>, vector<8x8xf32> -> vector<8x8xf32>
    %cst_17 = arith.constant dense<0xFF800000> : vector<8xf32>
    %36 = vector.multi_reduction <maximumf>, %35, %cst_17 [1] : vector<8x8xf32> to vector<8xf32>
    %37 = vector.shape_cast %36 : vector<8xf32> to vector<8x1xf32>
    %38 = vector.broadcast %37 : vector<8x1xf32> to vector<8x8xf32>
    %39 = arith.subf %35, %38 : vector<8x8xf32>
    %40 = math.exp %39 : vector<8x8xf32>
    %cst_18 = arith.constant dense<0.000000e+00> : vector<8xf32>
    %41 = vector.multi_reduction <add>, %40, %cst_18 [1] : vector<8x8xf32> to vector<8xf32>
    %42 = vector.shape_cast %41 : vector<8xf32> to vector<8x1xf32>
    %43 = vector.broadcast %42 : vector<8x1xf32> to vector<8x8xf32>
    %44 = arith.divf %40, %43 : vector<8x8xf32>
    %cst_19 = arith.constant dense<0.000000e+00> : vector<8x16xf32>
    %45 = tpu.matmul %44, %34, %cst_19 {dimension_numbers = #tpu.dot_dimension_numbers<[1], [0], [0], [1], [0, 0, 1, 1], [], []>} : vector<8x8xf32>, vector<8x16xf32>, vector<8x16xf32> -> vector<8x16xf32>
    %46 = vector.extract_strided_slice %26 {offsets = [0, 0], sizes = [16, 32], strides = [1, 1]} : vector<64x32xf32> to vector<16x32xf32>
    %cst_20 = arith.constant dense<0.000000e+00> : vector<8x32xf32>
    %47 = tpu.matmul %45, %46, %cst_20 {dimension_numbers = #tpu.dot_dimension_numbers<[1], [0], [0], [1], [0, 0, 1, 1], [], []>} : vector<8x16xf32>, vector<16x32xf32>, vector<8x32xf32> -> vector<8x32xf32>
    %48 = arith.addf %29, %47 : vector<8x32xf32>
    %49 = vector.extract_strided_slice %28 {offsets = [0, 48], sizes = [8, 16], strides = [1, 1]} : vector<8x192xf32> to vector<8x16xf32>
    %cst_21 = arith.constant 2.500000e-01 : f32
    %50 = vector.broadcast %cst_21 : f32 to vector<8x16xf32>
    %51 = arith.mulf %49, %50 : vector<8x16xf32>
    %52 = vector.extract_strided_slice %28 {offsets = [0, 64], sizes = [8, 16], strides = [1, 1]} : vector<8x192xf32> to vector<8x16xf32>
    %53 = vector.extract_strided_slice %28 {offsets = [0, 80], sizes = [8, 16], strides = [1, 1]} : vector<8x192xf32> to vector<8x16xf32>
    %cst_22 = arith.constant dense<0.000000e+00> : vector<8x8xf32>
    %54 = tpu.matmul %51, %52, %cst_22 {dimension_numbers = #tpu.dot_dimension_numbers<[1], [1], [0], [0], [0, 0, 1, 0], [], []>} : vector<8x16xf32>, vector<8x16xf32>, vector<8x8xf32> -> vector<8x8xf32>
    %cst_23 = arith.constant dense<0xFF800000> : vector<8xf32>
    %55 = vector.multi_reduction <maximumf>, %54, %cst_23 [1] : vector<8x8xf32> to vector<8xf32>
    %56 = vector.shape_cast %55 : vector<8xf32> to vector<8x1xf32>
    %57 = vector.broadcast %56 : vector<8x1xf32> to vector<8x8xf32>
    %58 = arith.subf %54, %57 : vector<8x8xf32>
    %59 = math.exp %58 : vector<8x8xf32>
    %cst_24 = arith.constant dense<0.000000e+00> : vector<8xf32>
    %60 = vector.multi_reduction <add>, %59, %cst_24 [1] : vector<8x8xf32> to vector<8xf32>
    %61 = vector.shape_cast %60 : vector<8xf32> to vector<8x1xf32>
    %62 = vector.broadcast %61 : vector<8x1xf32> to vector<8x8xf32>
    %63 = arith.divf %59, %62 : vector<8x8xf32>
    %cst_25 = arith.constant dense<0.000000e+00> : vector<8x16xf32>
    %64 = tpu.matmul %63, %53, %cst_25 {dimension_numbers = #tpu.dot_dimension_numbers<[1], [0], [0], [1], [0, 0, 1, 1], [], []>} : vector<8x8xf32>, vector<8x16xf32>, vector<8x16xf32> -> vector<8x16xf32>
    %65 = vector.extract_strided_slice %26 {offsets = [16, 0], sizes = [16, 32], strides = [1, 1]} : vector<64x32xf32> to vector<16x32xf32>
    %cst_26 = arith.constant dense<0.000000e+00> : vector<8x32xf32>
    %66 = tpu.matmul %64, %65, %cst_26 {dimension_numbers = #tpu.dot_dimension_numbers<[1], [0], [0], [1], [0, 0, 1, 1], [], []>} : vector<8x16xf32>, vector<16x32xf32>, vector<8x32xf32> -> vector<8x32xf32>
    %67 = arith.addf %48, %66 : vector<8x32xf32>
    %68 = vector.extract_strided_slice %28 {offsets = [0, 96], sizes = [8, 16], strides = [1, 1]} : vector<8x192xf32> to vector<8x16xf32>
    %cst_27 = arith.constant 2.500000e-01 : f32
    %69 = vector.broadcast %cst_27 : f32 to vector<8x16xf32>
    %70 = arith.mulf %68, %69 : vector<8x16xf32>
    %71 = vector.extract_strided_slice %28 {offsets = [0, 112], sizes = [8, 16], strides = [1, 1]} : vector<8x192xf32> to vector<8x16xf32>
    %72 = vector.extract_strided_slice %28 {offsets = [0, 128], sizes = [8, 16], strides = [1, 1]} : vector<8x192xf32> to vector<8x16xf32>
    %cst_28 = arith.constant dense<0.000000e+00> : vector<8x8xf32>
    %73 = tpu.matmul %70, %71, %cst_28 {dimension_numbers = #tpu.dot_dimension_numbers<[1], [1], [0], [0], [0, 0, 1, 0], [], []>} : vector<8x16xf32>, vector<8x16xf32>, vector<8x8xf32> -> vector<8x8xf32>
    %cst_29 = arith.constant dense<0xFF800000> : vector<8xf32>
    %74 = vector.multi_reduction <maximumf>, %73, %cst_29 [1] : vector<8x8xf32> to vector<8xf32>
    %75 = vector.shape_cast %74 : vector<8xf32> to vector<8x1xf32>
    %76 = vector.broadcast %75 : vector<8x1xf32> to vector<8x8xf32>
    %77 = arith.subf %73, %76 : vector<8x8xf32>
    %78 = math.exp %77 : vector<8x8xf32>
    %cst_30 = arith.constant dense<0.000000e+00> : vector<8xf32>
    %79 = vector.multi_reduction <add>, %78, %cst_30 [1] : vector<8x8xf32> to vector<8xf32>
    %80 = vector.shape_cast %79 : vector<8xf32> to vector<8x1xf32>
    %81 = vector.broadcast %80 : vector<8x1xf32> to vector<8x8xf32>
    %82 = arith.divf %78, %81 : vector<8x8xf32>
    %cst_31 = arith.constant dense<0.000000e+00> : vector<8x16xf32>
    %83 = tpu.matmul %82, %72, %cst_31 {dimension_numbers = #tpu.dot_dimension_numbers<[1], [0], [0], [1], [0, 0, 1, 1], [], []>} : vector<8x8xf32>, vector<8x16xf32>, vector<8x16xf32> -> vector<8x16xf32>
    %84 = vector.extract_strided_slice %26 {offsets = [32, 0], sizes = [16, 32], strides = [1, 1]} : vector<64x32xf32> to vector<16x32xf32>
    %cst_32 = arith.constant dense<0.000000e+00> : vector<8x32xf32>
    %85 = tpu.matmul %83, %84, %cst_32 {dimension_numbers = #tpu.dot_dimension_numbers<[1], [0], [0], [1], [0, 0, 1, 1], [], []>} : vector<8x16xf32>, vector<16x32xf32>, vector<8x32xf32> -> vector<8x32xf32>
    %86 = arith.addf %67, %85 : vector<8x32xf32>
    %87 = vector.extract_strided_slice %28 {offsets = [0, 144], sizes = [8, 16], strides = [1, 1]} : vector<8x192xf32> to vector<8x16xf32>
    %cst_33 = arith.constant 2.500000e-01 : f32
    %88 = vector.broadcast %cst_33 : f32 to vector<8x16xf32>
    %89 = arith.mulf %87, %88 : vector<8x16xf32>
    %90 = vector.extract_strided_slice %28 {offsets = [0, 160], sizes = [8, 16], strides = [1, 1]} : vector<8x192xf32> to vector<8x16xf32>
    %91 = vector.extract_strided_slice %28 {offsets = [0, 176], sizes = [8, 16], strides = [1, 1]} : vector<8x192xf32> to vector<8x16xf32>
    %cst_34 = arith.constant dense<0.000000e+00> : vector<8x8xf32>
    %92 = tpu.matmul %89, %90, %cst_34 {dimension_numbers = #tpu.dot_dimension_numbers<[1], [1], [0], [0], [0, 0, 1, 0], [], []>} : vector<8x16xf32>, vector<8x16xf32>, vector<8x8xf32> -> vector<8x8xf32>
    %cst_35 = arith.constant dense<0xFF800000> : vector<8xf32>
    %93 = vector.multi_reduction <maximumf>, %92, %cst_35 [1] : vector<8x8xf32> to vector<8xf32>
    %94 = vector.shape_cast %93 : vector<8xf32> to vector<8x1xf32>
    %95 = vector.broadcast %94 : vector<8x1xf32> to vector<8x8xf32>
    %96 = arith.subf %92, %95 : vector<8x8xf32>
    %97 = math.exp %96 : vector<8x8xf32>
    %cst_36 = arith.constant dense<0.000000e+00> : vector<8xf32>
    %98 = vector.multi_reduction <add>, %97, %cst_36 [1] : vector<8x8xf32> to vector<8xf32>
    %99 = vector.shape_cast %98 : vector<8xf32> to vector<8x1xf32>
    %100 = vector.broadcast %99 : vector<8x1xf32> to vector<8x8xf32>
    %101 = arith.divf %97, %100 : vector<8x8xf32>
    %cst_37 = arith.constant dense<0.000000e+00> : vector<8x16xf32>
    %102 = tpu.matmul %101, %91, %cst_37 {dimension_numbers = #tpu.dot_dimension_numbers<[1], [0], [0], [1], [0, 0, 1, 1], [], []>} : vector<8x8xf32>, vector<8x16xf32>, vector<8x16xf32> -> vector<8x16xf32>
    %103 = vector.extract_strided_slice %26 {offsets = [48, 0], sizes = [16, 32], strides = [1, 1]} : vector<64x32xf32> to vector<16x32xf32>
    %cst_38 = arith.constant dense<0.000000e+00> : vector<8x32xf32>
    %104 = tpu.matmul %102, %103, %cst_38 {dimension_numbers = #tpu.dot_dimension_numbers<[1], [0], [0], [1], [0, 0, 1, 1], [], []>} : vector<8x16xf32>, vector<16x32xf32>, vector<8x32xf32> -> vector<8x32xf32>
    %105 = arith.addf %86, %104 : vector<8x32xf32>
    %c0_39 = arith.constant 0 : index
    %c0_40 = arith.constant 0 : index
    %106 = vector.load %arg6[%c0_39, %c0_40] : memref<16x32xf32, #tpu.memory_space<vmem>>, vector<8x32xf32>
    tpu.vector_store %arg6[%c0_39, %c0_40], %105 {strides = array<i32>} : memref<16x32xf32, #tpu.memory_space<vmem>>, vector<8x32xf32>,
    %107 = vector.extract_strided_slice %27 {offsets = [8, 0], sizes = [8, 192], strides = [1, 1]} : vector<16x192xf32> to vector<8x192xf32>
    %cst_41 = arith.constant 0.000000e+00 : f32
    %108 = vector.broadcast %cst_41 : f32 to vector<8x32xf32>
    %109 = vector.extract_strided_slice %107 {offsets = [0, 0], sizes = [8, 16], strides = [1, 1]} : vector<8x192xf32> to vector<8x16xf32>
    %cst_42 = arith.constant 2.500000e-01 : f32
    %110 = vector.broadcast %cst_42 : f32 to vector<8x16xf32>
    %111 = arith.mulf %109, %110 : vector<8x16xf32>
    %112 = vector.extract_strided_slice %107 {offsets = [0, 16], sizes = [8, 16], strides = [1, 1]} : vector<8x192xf32> to vector<8x16xf32>
    %113 = vector.extract_strided_slice %107 {offsets = [0, 32], sizes = [8, 16], strides = [1, 1]} : vector<8x192xf32> to vector<8x16xf32>
    %cst_43 = arith.constant dense<0.000000e+00> : vector<8x8xf32>
    %114 = tpu.matmul %111, %112, %cst_43 {dimension_numbers = #tpu.dot_dimension_numbers<[1], [1], [0], [0], [0, 0, 1, 0], [], []>} : vector<8x16xf32>, vector<8x16xf32>, vector<8x8xf32> -> vector<8x8xf32>
    %cst_44 = arith.constant dense<0xFF800000> : vector<8xf32>
    %115 = vector.multi_reduction <maximumf>, %114, %cst_44 [1] : vector<8x8xf32> to vector<8xf32>
    %116 = vector.shape_cast %115 : vector<8xf32> to vector<8x1xf32>
    %117 = vector.broadcast %116 : vector<8x1xf32> to vector<8x8xf32>
    %118 = arith.subf %114, %117 : vector<8x8xf32>
    %119 = math.exp %118 : vector<8x8xf32>
    %cst_45 = arith.constant dense<0.000000e+00> : vector<8xf32>
    %120 = vector.multi_reduction <add>, %119, %cst_45 [1] : vector<8x8xf32> to vector<8xf32>
    %121 = vector.shape_cast %120 : vector<8xf32> to vector<8x1xf32>
    %122 = vector.broadcast %121 : vector<8x1xf32> to vector<8x8xf32>
    %123 = arith.divf %119, %122 : vector<8x8xf32>
    %cst_46 = arith.constant dense<0.000000e+00> : vector<8x16xf32>
    %124 = tpu.matmul %123, %113, %cst_46 {dimension_numbers = #tpu.dot_dimension_numbers<[1], [0], [0], [1], [0, 0, 1, 1], [], []>} : vector<8x8xf32>, vector<8x16xf32>, vector<8x16xf32> -> vector<8x16xf32>
    %125 = vector.extract_strided_slice %26 {offsets = [0, 0], sizes = [16, 32], strides = [1, 1]} : vector<64x32xf32> to vector<16x32xf32>
    %cst_47 = arith.constant dense<0.000000e+00> : vector<8x32xf32>
    %126 = tpu.matmul %124, %125, %cst_47 {dimension_numbers = #tpu.dot_dimension_numbers<[1], [0], [0], [1], [0, 0, 1, 1], [], []>} : vector<8x16xf32>, vector<16x32xf32>, vector<8x32xf32> -> vector<8x32xf32>
    %127 = arith.addf %108, %126 : vector<8x32xf32>
    %128 = vector.extract_strided_slice %107 {offsets = [0, 48], sizes = [8, 16], strides = [1, 1]} : vector<8x192xf32> to vector<8x16xf32>
    %cst_48 = arith.constant 2.500000e-01 : f32
    %129 = vector.broadcast %cst_48 : f32 to vector<8x16xf32>
    %130 = arith.mulf %128, %129 : vector<8x16xf32>
    %131 = vector.extract_strided_slice %107 {offsets = [0, 64], sizes = [8, 16], strides = [1, 1]} : vector<8x192xf32> to vector<8x16xf32>
    %132 = vector.extract_strided_slice %107 {offsets = [0, 80], sizes = [8, 16], strides = [1, 1]} : vector<8x192xf32> to vector<8x16xf32>
    %cst_49 = arith.constant dense<0.000000e+00> : vector<8x8xf32>
    %133 = tpu.matmul %130, %131, %cst_49 {dimension_numbers = #tpu.dot_dimension_numbers<[1], [1], [0], [0], [0, 0, 1, 0], [], []>} : vector<8x16xf32>, vector<8x16xf32>, vector<8x8xf32> -> vector<8x8xf32>
    %cst_50 = arith.constant dense<0xFF800000> : vector<8xf32>
    %134 = vector.multi_reduction <maximumf>, %133, %cst_50 [1] : vector<8x8xf32> to vector<8xf32>
    %135 = vector.shape_cast %134 : vector<8xf32> to vector<8x1xf32>
    %136 = vector.broadcast %135 : vector<8x1xf32> to vector<8x8xf32>
    %137 = arith.subf %133, %136 : vector<8x8xf32>
    %138 = math.exp %137 : vector<8x8xf32>
    %cst_51 = arith.constant dense<0.000000e+00> : vector<8xf32>
    %139 = vector.multi_reduction <add>, %138, %cst_51 [1] : vector<8x8xf32> to vector<8xf32>
    %140 = vector.shape_cast %139 : vector<8xf32> to vector<8x1xf32>
    %141 = vector.broadcast %140 : vector<8x1xf32> to vector<8x8xf32>
    %142 = arith.divf %138, %141 : vector<8x8xf32>
    %cst_52 = arith.constant dense<0.000000e+00> : vector<8x16xf32>
    %143 = tpu.matmul %142, %132, %cst_52 {dimension_numbers = #tpu.dot_dimension_numbers<[1], [0], [0], [1], [0, 0, 1, 1], [], []>} : vector<8x8xf32>, vector<8x16xf32>, vector<8x16xf32> -> vector<8x16xf32>
    %144 = vector.extract_strided_slice %26 {offsets = [16, 0], sizes = [16, 32], strides = [1, 1]} : vector<64x32xf32> to vector<16x32xf32>
    %cst_53 = arith.constant dense<0.000000e+00> : vector<8x32xf32>
    %145 = tpu.matmul %143, %144, %cst_53 {dimension_numbers = #tpu.dot_dimension_numbers<[1], [0], [0], [1], [0, 0, 1, 1], [], []>} : vector<8x16xf32>, vector<16x32xf32>, vector<8x32xf32> -> vector<8x32xf32>
    %146 = arith.addf %127, %145 : vector<8x32xf32>
    %147 = vector.extract_strided_slice %107 {offsets = [0, 96], sizes = [8, 16], strides = [1, 1]} : vector<8x192xf32> to vector<8x16xf32>
    %cst_54 = arith.constant 2.500000e-01 : f32
    %148 = vector.broadcast %cst_54 : f32 to vector<8x16xf32>
    %149 = arith.mulf %147, %148 : vector<8x16xf32>
    %150 = vector.extract_strided_slice %107 {offsets = [0, 112], sizes = [8, 16], strides = [1, 1]} : vector<8x192xf32> to vector<8x16xf32>
    %151 = vector.extract_strided_slice %107 {offsets = [0, 128], sizes = [8, 16], strides = [1, 1]} : vector<8x192xf32> to vector<8x16xf32>
    %cst_55 = arith.constant dense<0.000000e+00> : vector<8x8xf32>
    %152 = tpu.matmul %149, %150, %cst_55 {dimension_numbers = #tpu.dot_dimension_numbers<[1], [1], [0], [0], [0, 0, 1, 0], [], []>} : vector<8x16xf32>, vector<8x16xf32>, vector<8x8xf32> -> vector<8x8xf32>
    %cst_56 = arith.constant dense<0xFF800000> : vector<8xf32>
    %153 = vector.multi_reduction <maximumf>, %152, %cst_56 [1] : vector<8x8xf32> to vector<8xf32>
    %154 = vector.shape_cast %153 : vector<8xf32> to vector<8x1xf32>
    %155 = vector.broadcast %154 : vector<8x1xf32> to vector<8x8xf32>
    %156 = arith.subf %152, %155 : vector<8x8xf32>
    %157 = math.exp %156 : vector<8x8xf32>
    %cst_57 = arith.constant dense<0.000000e+00> : vector<8xf32>
    %158 = vector.multi_reduction <add>, %157, %cst_57 [1] : vector<8x8xf32> to vector<8xf32>
    %159 = vector.shape_cast %158 : vector<8xf32> to vector<8x1xf32>
    %160 = vector.broadcast %159 : vector<8x1xf32> to vector<8x8xf32>
    %161 = arith.divf %157, %160 : vector<8x8xf32>
    %cst_58 = arith.constant dense<0.000000e+00> : vector<8x16xf32>
    %162 = tpu.matmul %161, %151, %cst_58 {dimension_numbers = #tpu.dot_dimension_numbers<[1], [0], [0], [1], [0, 0, 1, 1], [], []>} : vector<8x8xf32>, vector<8x16xf32>, vector<8x16xf32> -> vector<8x16xf32>
    %163 = vector.extract_strided_slice %26 {offsets = [32, 0], sizes = [16, 32], strides = [1, 1]} : vector<64x32xf32> to vector<16x32xf32>
    %cst_59 = arith.constant dense<0.000000e+00> : vector<8x32xf32>
    %164 = tpu.matmul %162, %163, %cst_59 {dimension_numbers = #tpu.dot_dimension_numbers<[1], [0], [0], [1], [0, 0, 1, 1], [], []>} : vector<8x16xf32>, vector<16x32xf32>, vector<8x32xf32> -> vector<8x32xf32>
    %165 = arith.addf %146, %164 : vector<8x32xf32>
    %166 = vector.extract_strided_slice %107 {offsets = [0, 144], sizes = [8, 16], strides = [1, 1]} : vector<8x192xf32> to vector<8x16xf32>
    %cst_60 = arith.constant 2.500000e-01 : f32
    %167 = vector.broadcast %cst_60 : f32 to vector<8x16xf32>
    %168 = arith.mulf %166, %167 : vector<8x16xf32>
    %169 = vector.extract_strided_slice %107 {offsets = [0, 160], sizes = [8, 16], strides = [1, 1]} : vector<8x192xf32> to vector<8x16xf32>
    %170 = vector.extract_strided_slice %107 {offsets = [0, 176], sizes = [8, 16], strides = [1, 1]} : vector<8x192xf32> to vector<8x16xf32>
    %cst_61 = arith.constant dense<0.000000e+00> : vector<8x8xf32>
    %171 = tpu.matmul %168, %169, %cst_61 {dimension_numbers = #tpu.dot_dimension_numbers<[1], [1], [0], [0], [0, 0, 1, 0], [], []>} : vector<8x16xf32>, vector<8x16xf32>, vector<8x8xf32> -> vector<8x8xf32>
    %cst_62 = arith.constant dense<0xFF800000> : vector<8xf32>
    %172 = vector.multi_reduction <maximumf>, %171, %cst_62 [1] : vector<8x8xf32> to vector<8xf32>
    %173 = vector.shape_cast %172 : vector<8xf32> to vector<8x1xf32>
    %174 = vector.broadcast %173 : vector<8x1xf32> to vector<8x8xf32>
    %175 = arith.subf %171, %174 : vector<8x8xf32>
    %176 = math.exp %175 : vector<8x8xf32>
    %cst_63 = arith.constant dense<0.000000e+00> : vector<8xf32>
    %177 = vector.multi_reduction <add>, %176, %cst_63 [1] : vector<8x8xf32> to vector<8xf32>
    %178 = vector.shape_cast %177 : vector<8xf32> to vector<8x1xf32>
    %179 = vector.broadcast %178 : vector<8x1xf32> to vector<8x8xf32>
    %180 = arith.divf %176, %179 : vector<8x8xf32>
    %cst_64 = arith.constant dense<0.000000e+00> : vector<8x16xf32>
    %181 = tpu.matmul %180, %170, %cst_64 {dimension_numbers = #tpu.dot_dimension_numbers<[1], [0], [0], [1], [0, 0, 1, 1], [], []>} : vector<8x8xf32>, vector<8x16xf32>, vector<8x16xf32> -> vector<8x16xf32>
    %182 = vector.extract_strided_slice %26 {offsets = [48, 0], sizes = [16, 32], strides = [1, 1]} : vector<64x32xf32> to vector<16x32xf32>
    %cst_65 = arith.constant dense<0.000000e+00> : vector<8x32xf32>
    %183 = tpu.matmul %181, %182, %cst_65 {dimension_numbers = #tpu.dot_dimension_numbers<[1], [0], [0], [1], [0, 0, 1, 1], [], []>} : vector<8x16xf32>, vector<16x32xf32>, vector<8x32xf32> -> vector<8x32xf32>
    %184 = arith.addf %165, %183 : vector<8x32xf32>
    %c8 = arith.constant 8 : index
    %c0_66 = arith.constant 0 : index
    %185 = vector.load %arg6[%c8, %c0_66] : memref<16x32xf32, #tpu.memory_space<vmem>>, vector<8x32xf32>
    tpu.vector_store %arg6[%c8, %c0_66], %184 {strides = array<i32>} : memref<16x32xf32, #tpu.memory_space<vmem>>, vector<8x32xf32>,
    return
  }
  func.func @transform_0(%arg0: i32) -> (i32, i32) {
    %c0_i32 = arith.constant 0 : i32
    %c0_i32_0 = arith.constant 0 : i32
    return %arg0, %c0_i32 : i32, i32
  }
  func.func @transform_1(%arg0: i32) -> (i32, i32) {
    %c0_i32 = arith.constant 0 : i32
    %c0_i32_0 = arith.constant 0 : i32
    %c0_i32_1 = arith.constant 0 : i32
    return %c0_i32, %c0_i32_0 : i32, i32
  }
  func.func @transform_2(%arg0: i32) -> (i32, i32) {
    %c0_i32 = arith.constant 0 : i32
    %c0_i32_0 = arith.constant 0 : i32
    %c0_i32_1 = arith.constant 0 : i32
    return %c0_i32, %c0_i32_0 : i32, i32
  }
  func.func @transform_3(%arg0: i32) -> (i32, i32) {
    %c0_i32 = arith.constant 0 : i32
    %c0_i32_0 = arith.constant 0 : i32
    %c0_i32_1 = arith.constant 0 : i32
    return %c0_i32, %c0_i32_0 : i32, i32
  }
  func.func @transform_4(%arg0: i32) -> (i32, i32) {
    %c0_i32 = arith.constant 0 : i32
    %c0_i32_0 = arith.constant 0 : i32
    %c0_i32_1 = arith.constant 0 : i32
    return %c0_i32, %c0_i32_0 : i32, i32
  }
  func.func @transform_5(%arg0: i32) -> (i32, i32) {
    %c0_i32 = arith.constant 0 : i32
    %c0_i32_0 = arith.constant 0 : i32
    return %arg0, %c0_i32 : i32, i32
  }
}

</mosaic_0001>

<llo_original>
// kernel: tpu_custom_call.1
$region0: #{tpu_custom_call.1}
  #allocation0 [shape = 'u32[]', space=smem, size = 0x4, offset = 0x4, fixed_abs, tag = 'smem constant byte address 0x4 - core index']
  #allocation1 [shape = 'u32[144,128]{1,0:T(1,128)}', space=vmem, size = 0x12000, scoped, tag = 'internal scratch']
  %s0 = inlined_call_operand.vmem [shape: f32[16,32], index: 0, kind: input, shape index: {}]
  %s1 = inlined_call_operand.vmem [shape: f32[32,192], index: 1, kind: input, shape index: {}]
  %s2 = inlined_call_operand.vmem [shape: f32[64,32], index: 2, kind: input, shape index: {}]
  %s3 = inlined_call_operand.vmem [shape: f32[1,32], index: 3, kind: input, shape index: {}]
  %s4 = inlined_call_operand.vmem [shape: f32[1,32], index: 4, kind: input, shape index: {}]
  %s5 = inlined_call_operand.hbm [shape: f32[16,32], index: 5, kind: output, shape index: {}]
  %s6 = sld [smem:[#allocation0]]
  $region30: #{tpu_custom_call.1} parent=0
    _
  %s8 = ssub.s32 1, %s6
  %s9 = scalar_select 0, %s8, %s6
  $region1: #{tpu_custom_call.1} parent=0
    #allocation2 [shape = 'u8[8192]{0}', space=vmem, size = 0x2000, scoped, tag = 'output window, operand 0, single buffered']
    #allocation3 [shape = 's32[1]{0}', space=sflag, size = 0x4, scoped, tag = 'scoped memory for tpu_custom_call.1']
    %10 = vsyncpa [#allocation3], 0
    // Predicated region
    $region2: #{tpu_custom_call.1} parent=1 // pred_check
      _
    $region3: #{tpu_custom_call.1} parent=1 // pred_check_branch
      %12 = sbr.rel (0) target = $region5
    $region4: #{tpu_custom_call.1} parent=1 // pred_region
      _
    $region5: #{tpu_custom_call.1} parent=1 // pred_fallthru
      _
    // Predicated region
    $region6: #{tpu_custom_call.1} parent=1 // pred_check
      _
    $region7: #{tpu_custom_call.1} parent=1 // pred_check_branch
      %14 = sbr.rel (0) target = $region9
    $region8: #{tpu_custom_call.1} parent=1 // pred_region
      _
    $region9: #{tpu_custom_call.1} parent=1 // pred_fallthru
      _
    // Predicated region
    $region10: #{tpu_custom_call.1} parent=1 // pred_check
      _
    $region11: #{tpu_custom_call.1} parent=1 // pred_check_branch
      %16 = sbr.rel (0) target = $region13
    $region12: #{tpu_custom_call.1} parent=1 // pred_region
      _
    $region13: #{tpu_custom_call.1} parent=1 // pred_fallthru
      _
    // Predicated region
    $region14: #{tpu_custom_call.1} parent=1 // pred_check
      _
    $region15: #{tpu_custom_call.1} parent=1 // pred_check_branch
      %18 = sbr.rel (0) target = $region17
    $region16: #{tpu_custom_call.1} parent=1 // pred_region
      _
    $region17: #{tpu_custom_call.1} parent=1 // pred_fallthru
      _
    // Predicated region
    $region18: #{tpu_custom_call.1} parent=1 // pred_check
      _
    $region19: #{tpu_custom_call.1} parent=1 // pred_check_branch
      %20 = sbr.rel (0) target = $region21
    $region20: #{tpu_custom_call.1} parent=1 // pred_region
      _
    $region21: #{tpu_custom_call.1} parent=1 // pred_fallthru
      _
    %v21 = vld [vmem:[%s0] sm:$0xff]
    %v22 = vld [vmem:[%s0 + $0x8] sm:$0xff]
    %vm23 = vcmask 261120
    %v24 = vsel %vm23, %v21, 0.0
    %25 = vadd.xlane.f32.xlu0 %v24
    %v26 = vpop.xlane.xlu0 %25
    %v27 = vsel %vm23, %v22, 0.0
    %28 = vadd.xlane.f32.xlu0 %v27
    %v29 = vpop.xlane.xlu0 %28
    %v30 = vrcp.pop 32.0
    %v31 = vmul.f32 %v26, %v30
    %v32 = vmul.f32 %v29, %v30
    %v33 = vsub.f32 %v21, %v31
    %v34 = vsub.f32 %v22, %v32
    %v35 = vmul.f32 %v33, %v33
    %v36 = vmul.f32 %v34, %v34
    %v37 = vsel %vm23, %v35, 0.0
    %38 = vadd.xlane.f32.xlu0 %v37
    %v39 = vpop.xlane.xlu0 %38
    %v40 = vsel %vm23, %v36, 0.0
    %41 = vadd.xlane.f32.xlu0 %v40
    %v42 = vpop.xlane.xlu0 %41
    %v43 = vmul.f32 %v39, %v30
    %v44 = vmul.f32 %v42, %v30
    %v45 = vadd.f32 %v43, 1e-05
    %v46 = vadd.f32 %v44, 1e-05
    %v47 = vrsqrt.pop %v45
    %v48 = vrsqrt.pop %v46
    %v49 = vmul.f32 %v33, %v47
    %v50 = vmul.f32 %v34, %v48
    %v51 = vld [vmem:[%s3] sm:$0x1]
    %v53 = vlaneseq
    %v54 = vshrl.u32 %v53, 7
    %v55 = vsub.s32 0, %v54
    %v56 = vrot.slane %v51, %v55
    %v58 = vmul.f32 %v49, %v56
    %v59 = vmul.f32 %v50, %v56
    %v60 = vld [vmem:[%s4] sm:$0x1]
    %v62 = vlaneseq
    %v63 = vshrl.u32 %v62, 7
    %v64 = vsub.s32 0, %v63
    %v65 = vrot.slane %v60, %v64
    %v67 = vadd.f32 %v58, %v65
    %v68 = vadd.f32 %v59, %v65
    %v69 = vld [vmem:[%s1] sm:$0xff]
    %v70 = vld [vmem:[%s1 + $0x8] sm:$0xff]
    %v71 = vld [vmem:[%s1 + $0x10] sm:$0xff]
    %v72 = vld [vmem:[%s1 + $0x18] sm:$0xff]
    %v73 = vld [vmem:[%s1 + $0x20] sm:$0xff]
    %v74 = vld [vmem:[%s1 + $0x28] sm:$0xff]
    %v75 = vld [vmem:[%s1 + $0x30] sm:$0xff]
    %v76 = vld [vmem:[%s1 + $0x38] sm:$0xff]
    %v77 = vld [vmem:[%s2] sm:$0xff]
    %v78 = vld [vmem:[%s2 + $0x8] sm:$0xff]
    %v79 = vld [vmem:[%s2 + $0x10] sm:$0xff]
    %v80 = vld [vmem:[%s2 + $0x18] sm:$0xff]
    %v81 = vld [vmem:[%s2 + $0x20] sm:$0xff]
    %v82 = vld [vmem:[%s2 + $0x28] sm:$0xff]
    %v83 = vld [vmem:[%s2 + $0x30] sm:$0xff]
    %v84 = vld [vmem:[%s2 + $0x38] sm:$0xff]
    %v86 = vsel %vm23, %v67, 0
    %v89 = vsel %vm23, %v68, 0
    %91 = vmatprep.subr.mxu0 %v70
    %92 = vmatpush1.msra.mxu0 %v69
    %93 = vmatprep.subr.mxu0 %v72
    %94 = vmatpush1.msra.mxu0 %v71
    %95 = vmatprep.subr.mxu0 %v74
    %96 = vmatpush1.msra.mxu0 %v73
    %97 = vmatprep.subr.mxu0 %v76
    %98 = vmatpush1.msra.mxu0 %v75
    %99 = vmatprep.subr.mxu0 0.0
    %100 = vmatpush1.msra.mxu0 0.0
    %101 = vmatprep.subr.mxu0 0.0
    %102 = vmatpush1.msra.mxu0 0.0
    %103 = vmatprep.subr.mxu0 0.0
    %104 = vmatpush1.msra.mxu0 0.0
    %105 = vmatprep.subr.mxu0 0.0
    %106 = vmatpush1.msra.mxu0 0.0
    %107 = vmatprep.subr.mxu0 0.0
    %108 = vmatpush1.msra.mxu0 0.0
    %109 = vmatprep.subr.mxu0 0.0
    %110 = vmatpush1.msra.mxu0 0.0
    %111 = vmatprep.subr.mxu0 0.0
    %112 = vmatpush1.msra.mxu0 0.0
    %113 = vmatprep.subr.mxu0 0.0
    %114 = vmatpush1.msra.mxu0 0.0
    %115 = vmatprep.subr.mxu0 0.0
    %116 = vmatpush1.msra.mxu0 0.0
    %117 = vmatprep.subr.mxu0 0.0
    %118 = vmatpush1.msra.mxu0 0.0
    %119 = vmatprep.subr.mxu0 0.0
    %120 = vmatpush1.msra.mxu0 0.0
    %121 = vmatprep.subr.mxu0 0.0
    %122 = vmatpush1.msra.mxu0 0.0
    %123 = vmatprep.subr.mxu0 0.0
    %124 = vmatpush1.msra.mxu0 0.0
    %125 = vmatprep.subr.mxu0 0.0
    %126 = vmatpush1.msra.mxu0 0.0
    %127 = vmatprep.subr.mxu0 0.0
    %128 = vmatpush1.msra.mxu0 0.0
    %129 = vmatprep.subr.mxu0 0.0
    %130 = vmatpush1.msra.mxu0 0.0
    %131 = vmatprep.subr.mxu0 0.0
    %132 = vmatpush1.msra.mxu0 0.0
    %133 = vmatprep.subr.mxu0 0.0
    %134 = vmatpush1.msra.mxu0 0.0
    %135 = vmatprep.subr.mxu0 0.0
    %136 = vmatpush1.msra.mxu0 0.0
    %137 = vmatprep.subr.mxu0 0.0
    %138 = vmatpush1.msra.mxu0 0.0
    %139 = vmatprep.subr.mxu0 0.0
    %140 = vmatpush1.msra.mxu0 0.0
    %141 = vmatprep.subr.mxu0 0.0
    %142 = vmatpush1.msra.mxu0 0.0
    %143 = vmatprep.subr.mxu0 0.0
    %144 = vmatpush1.msra.mxu0 0.0
    %145 = vmatprep.subr.mxu0 0.0
    %146 = vmatpush1.msra.mxu0 0.0
    %147 = vmatprep.subr.mxu0 0.0
    %148 = vmatpush1.msra.mxu0 0.0
    %149 = vmatprep.subr.mxu0 0.0
    %150 = vmatpush1.msra.mxu0 0.0
    %151 = vmatprep.subr.mxu0 0.0
    %152 = vmatpush1.msra.mxu0 0.0
    %153 = vmatprep.subr.mxu0 0.0
    %154 = vmatpush1.msra.mxu0 0.0
    %155 = vmatprep.mubr.f32.mxu0 0.0
    %156 = vmatmul.mubr.f32.gmra.mrb[0].mxu0 %v86
    %v157 = vpop.f32.mrb[0].mxu0
    %v158 = vadd.f32 0.0, %v157
    %v159 = vpop.f32.mrb[0].mxu0
    %v160 = vadd.f32 0.0, %v159
    %161 = vmatprep.mubr.f32.mxu0 0.0
    %162 = vmatmul.mubr.f32.gmra.mrb[0].mxu0 %v89
    %v163 = vpop.f32.mrb[0].mxu0
    %v164 = vadd.f32 0.0, %v163
    %v165 = vpop.f32.mrb[0].mxu0
    %v166 = vadd.f32 0.0, %v165
    %167 = vdwg.mxu0
    %v168 = vmul.f32 %v158, 0.25
    %170 = vrot.lane.b32.xlu0 %v158, 112
    %v171 = vpop.permute.xlu0 %170
    %vm172 = vcmask 130048
    %v174 = vsel %vm172, %v168, 0
    %v176 = vsel %vm172, %v171, 0
    %178 = vmatprep.subr.mxu0 0.0
    %179 = vmatpush1.xpose.msra.mxu0 %v176
    %180 = vmatprep.subr.mxu0 0.0
    %181 = vmatpush1.xpose.msra.mxu0 0.0
    %182 = vmatprep.subr.mxu0 0.0
    %183 = vmatpush1.xpose.msra.mxu0 0.0
    %184 = vmatprep.subr.mxu0 0.0
    %185 = vmatpush1.xpose.msra.mxu0 0.0
    %186 = vmatprep.subr.mxu0 0.0
    %187 = vmatpush1.xpose.msra.mxu0 0.0
    %188 = vmatprep.subr.mxu0 0.0
    %189 = vmatpush1.xpose.msra.mxu0 0.0
    %190 = vmatprep.subr.mxu0 0.0
    %191 = vmatpush1.xpose.msra.mxu0 0.0
    %192 = vmatprep.subr.mxu0 0.0
    %193 = vmatpush1.xpose.msra.mxu0 0.0
    %194 = vmatprep.subr.mxu0 0.0
    %195 = vmatpush1.xpose.msra.mxu0 0.0
    %196 = vmatprep.subr.mxu0 0.0
    %197 = vmatpush1.xpose.msra.mxu0 0.0
    %198 = vmatprep.subr.mxu0 0.0
    %199 = vmatpush1.xpose.msra.mxu0 0.0
    %200 = vmatprep.subr.mxu0 0.0
    %201 = vmatpush1.xpose.msra.mxu0 0.0
    %202 = vmatprep.subr.mxu0 0.0
    %203 = vmatpush1.xpose.msra.mxu0 0.0
    %204 = vmatprep.subr.mxu0 0.0
    %205 = vmatpush1.xpose.msra.mxu0 0.0
    %206 = vmatprep.subr.mxu0 0.0
    %207 = vmatpush1.xpose.msra.mxu0 0.0
    %208 = vmatprep.subr.mxu0 0.0
    %209 = vmatpush1.xpose.msra.mxu0 0.0
    %210 = vmatprep.subr.mxu0 0.0
    %211 = vmatpush1.xpose.msra.mxu0 0.0
    %212 = vmatprep.subr.mxu0 0.0
    %213 = vmatpush1.xpose.msra.mxu0 0.0
    %214 = vmatprep.subr.mxu0 0.0
    %215 = vmatpush1.xpose.msra.mxu0 0.0
    %216 = vmatprep.subr.mxu0 0.0
    %217 = vmatpush1.xpose.msra.mxu0 0.0
    %218 = vmatprep.subr.mxu0 0.0
    %219 = vmatpush1.xpose.msra.mxu0 0.0
    %220 = vmatprep.subr.mxu0 0.0
    %221 = vmatpush1.xpose.msra.mxu0 0.0
    %222 = vmatprep.subr.mxu0 0.0
    %223 = vmatpush1.xpose.msra.mxu0 0.0
    %224 = vmatprep.subr.mxu0 0.0
    %225 = vmatpush1.xpose.msra.mxu0 0.0
    %226 = vmatprep.subr.mxu0 0.0
    %227 = vmatpush1.xpose.msra.mxu0 0.0
    %228 = vmatprep.subr.mxu0 0.0
    %229 = vmatpush1.xpose.msra.mxu0 0.0
    %230 = vmatprep.subr.mxu0 0.0
    %231 = vmatpush1.xpose.msra.mxu0 0.0
    %232 = vmatprep.subr.mxu0 0.0
    %233 = vmatpush1.xpose.msra.mxu0 0.0
    %234 = vmatprep.subr.mxu0 0.0
    %235 = vmatpush1.xpose.msra.mxu0 0.0
    %236 = vmatprep.subr.mxu0 0.0
    %237 = vmatpush1.xpose.msra.mxu0 0.0
    %238 = vmatprep.subr.mxu0 0.0
    %239 = vmatpush1.xpose.msra.mxu0 0.0
    %240 = vmatprep.subr.mxu0 0.0
    %241 = vmatpush1.xpose.msra.mxu0 0.0
    %242 = vmatprep.mubr.f32.mxu0 0.0
    %243 = vmatmul.mubr.f32.gmra.mrb[0].mxu0 %v174
    %v244 = vpop.f32.mrb[0].mxu0
    %v245 = vadd.f32 0.0, %v244
    %v246 = vpop.f32.mrb[0].mxu0
    %247 = vdwg.mxu0
    %vm248 = vcmask 64512
    %v249 = vsel %vm248, %v245, -inf
    %250 = vmax.xlane.f32.xlu0 %v249
    %v251 = vpop.xlane.xlu0 %250
    %v252 = vsub.f32 %v245, %v251
    %v253 = vmul.f32 %v252, 1.442695
    %v254 = vpow.pop %v253
    %v255 = vsel %vm248, %v254, 0.0
    %256 = vadd.xlane.f32.xlu0 %v255
    %v257 = vpop.xlane.xlu0 %256
    %v258 = vrcp.pop %v257
    %v259 = vmul.f32 %v254, %v258
    %260 = vrot.lane.b32.xlu0 %v158, 96
    %v261 = vpop.permute.xlu0 %260
    %v264 = vsel %vm248, %v259, 0
    %266 = vmatprep.subr.mxu0 0.0
    %267 = vmatpush1.msra.mxu0 %v261
    %268 = vmatprep.subr.mxu0 0.0
    %269 = vmatpush1.msra.mxu0 0.0
    %270 = vmatprep.subr.mxu0 0.0
    %271 = vmatpush1.msra.mxu0 0.0
    %272 = vmatprep.subr.mxu0 0.0
    %273 = vmatpush1.msra.mxu0 0.0
    %274 = vmatprep.subr.mxu0 0.0
    %275 = vmatpush1.msra.mxu0 0.0
    %276 = vmatprep.subr.mxu0 0.0
    %277 = vmatpush1.msra.mxu0 0.0
    %278 = vmatprep.subr.mxu0 0.0
    %279 = vmatpush1.msra.mxu0 0.0
    %280 = vmatprep.subr.mxu0 0.0
    %281 = vmatpush1.msra.mxu0 0.0
    %282 = vmatprep.subr.mxu0 0.0
    %283 = vmatpush1.msra.mxu0 0.0
    %284 = vmatprep.subr.mxu0 0.0
    %285 = vmatpush1.msra.mxu0 0.0
    %286 = vmatprep.subr.mxu0 0.0
    %287 = vmatpush1.msra.mxu0 0.0
    %288 = vmatprep.subr.mxu0 0.0
    %289 = vmatpush1.msra.mxu0 0.0
    %290 = vmatprep.subr.mxu0 0.0
    %291 = vmatpush1.msra.mxu0 0.0
    %292 = vmatprep.subr.mxu0 0.0
    %293 = vmatpush1.msra.mxu0 0.0
    %294 = vmatprep.subr.mxu0 0.0
    %295 = vmatpush1.msra.mxu0 0.0
    %296 = vmatprep.subr.mxu0 0.0
    %297 = vmatpush1.msra.mxu0 0.0
    %298 = vmatprep.subr.mxu0 0.0
    %299 = vmatpush1.msra.mxu0 0.0
    %300 = vmatprep.subr.mxu0 0.0
    %301 = vmatpush1.msra.mxu0 0.0
    %302 = vmatprep.subr.mxu0 0.0
    %303 = vmatpush1.msra.mxu0 0.0
    %304 = vmatprep.subr.mxu0 0.0
    %305 = vmatpush1.msra.mxu0 0.0
    %306 = vmatprep.subr.mxu0 0.0
    %307 = vmatpush1.msra.mxu0 0.0
    %308 = vmatprep.subr.mxu0 0.0
    %309 = vmatpush1.msra.mxu0 0.0
    %310 = vmatprep.subr.mxu0 0.0
    %311 = vmatpush1.msra.mxu0 0.0
    %312 = vmatprep.subr.mxu0 0.0
    %313 = vmatpush1.msra.mxu0 0.0
    %314 = vmatprep.subr.mxu0 0.0
    %315 = vmatpush1.msra.mxu0 0.0
    %316 = vmatprep.subr.mxu0 0.0
    %317 = vmatpush1.msra.mxu0 0.0
    %318 = vmatprep.subr.mxu0 0.0
    %319 = vmatpush1.msra.mxu0 0.0
    %320 = vmatprep.subr.mxu0 0.0
    %321 = vmatpush1.msra.mxu0 0.0
    %322 = vmatprep.subr.mxu0 0.0
    %323 = vmatpush1.msra.mxu0 0.0
    %324 = vmatprep.subr.mxu0 0.0
    %325 = vmatpush1.msra.mxu0 0.0
    %326 = vmatprep.subr.mxu0 0.0
    %327 = vmatpush1.msra.mxu0 0.0
    %328 = vmatprep.subr.mxu0 0.0
    %329 = vmatpush1.msra.mxu0 0.0
    %330 = vmatprep.mubr.f32.mxu0 0.0
    %331 = vmatmul.mubr.f32.gmra.mrb[0].mxu0 %v264
    %v332 = vpop.f32.mrb[0].mxu0
    %v333 = vadd.f32 0.0, %v332
    %v334 = vpop.f32.mrb[0].mxu0
    %335 = vdwg.mxu0
    %336 = vrot.lane.b32.xlu0 %v168, 80
    %v337 = vpop.permute.xlu0 %336
    %338 = vrot.lane.b32.xlu0 %v158, 64
    %v339 = vpop.permute.xlu0 %338
    %v340 = vsel %vm172, %v337, 0
    %v342 = vsel %vm172, %v339, 0
    %344 = vmatprep.subr.mxu0 0.0
    %345 = vmatpush1.xpose.msra.mxu0 %v342
    %346 = vmatprep.subr.mxu0 0.0
    %347 = vmatpush1.xpose.msra.mxu0 0.0
    %348 = vmatprep.subr.mxu0 0.0
    %349 = vmatpush1.xpose.msra.mxu0 0.0
    %350 = vmatprep.subr.mxu0 0.0
    %351 = vmatpush1.xpose.msra.mxu0 0.0
    %352 = vmatprep.subr.mxu0 0.0
    %353 = vmatpush1.xpose.msra.mxu0 0.0
    %354 = vmatprep.subr.mxu0 0.0
    %355 = vmatpush1.xpose.msra.mxu0 0.0
    %356 = vmatprep.subr.mxu0 0.0
    %357 = vmatpush1.xpose.msra.mxu0 0.0
    %358 = vmatprep.subr.mxu0 0.0
    %359 = vmatpush1.xpose.msra.mxu0 0.0
    %360 = vmatprep.subr.mxu0 0.0
    %361 = vmatpush1.xpose.msra.mxu0 0.0
    %362 = vmatprep.subr.mxu0 0.0
    %363 = vmatpush1.xpose.msra.mxu0 0.0
    %364 = vmatprep.subr.mxu0 0.0
    %365 = vmatpush1.xpose.msra.mxu0 0.0
    %366 = vmatprep.subr.mxu0 0.0
    %367 = vmatpush1.xpose.msra.mxu0 0.0
    %368 = vmatprep.subr.mxu0 0.0
    %369 = vmatpush1.xpose.msra.mxu0 0.0
    %370 = vmatprep.subr.mxu0 0.0
    %371 = vmatpush1.xpose.msra.mxu0 0.0
    %372 = vmatprep.subr.mxu0 0.0
    %373 = vmatpush1.xpose.msra.mxu0 0.0
    %374 = vmatprep.subr.mxu0 0.0
    %375 = vmatpush1.xpose.msra.mxu0 0.0
    %376 = vmatprep.subr.mxu0 0.0
    %377 = vmatpush1.xpose.msra.mxu0 0.0
    %378 = vmatprep.subr.mxu0 0.0
    %379 = vmatpush1.xpose.msra.mxu0 0.0
    %380 = vmatprep.subr.mxu0 0.0
    %381 = vmatpush1.xpose.msra.mxu0 0.0
    %382 = vmatprep.subr.mxu0 0.0
    %383 = vmatpush1.xpose.msra.mxu0 0.0
    %384 = vmatprep.subr.mxu0 0.0
    %385 = vmatpush1.xpose.msra.mxu0 0.0
    %386 = vmatprep.subr.mxu0 0.0
    %387 = vmatpush1.xpose.msra.mxu0 0.0
    %388 = vmatprep.subr.mxu0 0.0
    %389 = vmatpush1.xpose.msra.mxu0 0.0
    %390 = vmatprep.subr.mxu0 0.0
    %391 = vmatpush1.xpose.msra.mxu0 0.0
    %392 = vmatprep.subr.mxu0 0.0
    %393 = vmatpush1.xpose.msra.mxu0 0.0
    %394 = vmatprep.subr.mxu0 0.0
    %395 = vmatpush1.xpose.msra.mxu0 0.0
    %396 = vmatprep.subr.mxu0 0.0
    %397 = vmatpush1.xpose.msra.mxu0 0.0
    %398 = vmatprep.subr.mxu0 0.0
    %399 = vmatpush1.xpose.msra.mxu0 0.0
    %400 = vmatprep.subr.mxu0 0.0
    %401 = vmatpush1.xpose.msra.mxu0 0.0
    %402 = vmatprep.subr.mxu0 0.0
    %403 = vmatpush1.xpose.msra.mxu0 0.0
    %404 = vmatprep.subr.mxu0 0.0
    %405 = vmatpush1.xpose.msra.mxu0 0.0
    %406 = vmatprep.subr.mxu0 0.0
    %407 = vmatpush1.xpose.msra.mxu0 0.0
    %408 = vmatprep.mubr.f32.mxu0 0.0
    %409 = vmatmul.mubr.f32.gmra.mrb[0].mxu0 %v340
    %v410 = vpop.f32.mrb[0].mxu0
    %v411 = vadd.f32 0.0, %v410
    %v412 = vpop.f32.mrb[0].mxu0
    %413 = vdwg.mxu0
    %v414 = vsel %vm248, %v411, -inf
    %415 = vmax.xlane.f32.xlu0 %v414
    %v416 = vpop.xlane.xlu0 %415
    %v417 = vsub.f32 %v411, %v416
    %v418 = vmul.f32 %v417, 1.442695
    %v419 = vpow.pop %v418
    %v420 = vsel %vm248, %v419, 0.0
    %421 = vadd.xlane.f32.xlu0 %v420
    %v422 = vpop.xlane.xlu0 %421
    %v423 = vrcp.pop %v422
    %v424 = vmul.f32 %v419, %v423
    %425 = vrot.lane.b32.xlu0 %v158, 48
    %v426 = vpop.permute.xlu0 %425
    %v429 = vsel %vm248, %v424, 0
    %431 = vmatprep.subr.mxu0 0.0
    %432 = vmatpush1.msra.mxu0 %v426
    %433 = vmatprep.subr.mxu0 0.0
    %434 = vmatpush1.msra.mxu0 0.0
    %435 = vmatprep.subr.mxu0 0.0
    %436 = vmatpush1.msra.mxu0 0.0
    %437 = vmatprep.subr.mxu0 0.0
    %438 = vmatpush1.msra.mxu0 0.0
    %439 = vmatprep.subr.mxu0 0.0
    %440 = vmatpush1.msra.mxu0 0.0
    %441 = vmatprep.subr.mxu0 0.0
    %442 = vmatpush1.msra.mxu0 0.0
    %443 = vmatprep.subr.mxu0 0.0
    %444 = vmatpush1.msra.mxu0 0.0
    %445 = vmatprep.subr.mxu0 0.0
    %446 = vmatpush1.msra.mxu0 0.0
    %447 = vmatprep.subr.mxu0 0.0
    %448 = vmatpush1.msra.mxu0 0.0
    %449 = vmatprep.subr.mxu0 0.0
    %450 = vmatpush1.msra.mxu0 0.0
    %451 = vmatprep.subr.mxu0 0.0
    %452 = vmatpush1.msra.mxu0 0.0
    %453 = vmatprep.subr.mxu0 0.0
    %454 = vmatpush1.msra.mxu0 0.0
    %455 = vmatprep.subr.mxu0 0.0
    %456 = vmatpush1.msra.mxu0 0.0
    %457 = vmatprep.subr.mxu0 0.0
    %458 = vmatpush1.msra.mxu0 0.0
    %459 = vmatprep.subr.mxu0 0.0
    %460 = vmatpush1.msra.mxu0 0.0
    %461 = vmatprep.subr.mxu0 0.0
    %462 = vmatpush1.msra.mxu0 0.0
    %463 = vmatprep.subr.mxu0 0.0
    %464 = vmatpush1.msra.mxu0 0.0
    %465 = vmatprep.subr.mxu0 0.0
    %466 = vmatpush1.msra.mxu0 0.0
    %467 = vmatprep.subr.mxu0 0.0
    %468 = vmatpush1.msra.mxu0 0.0
    %469 = vmatprep.subr.mxu0 0.0
    %470 = vmatpush1.msra.mxu0 0.0
    %471 = vmatprep.subr.mxu0 0.0
    %472 = vmatpush1.msra.mxu0 0.0
    %473 = vmatprep.subr.mxu0 0.0
    %474 = vmatpush1.msra.mxu0 0.0
    %475 = vmatprep.subr.mxu0 0.0
    %476 = vmatpush1.msra.mxu0 0.0
    %477 = vmatprep.subr.mxu0 0.0
    %478 = vmatpush1.msra.mxu0 0.0
    %479 = vmatprep.subr.mxu0 0.0
    %480 = vmatpush1.msra.mxu0 0.0
    %481 = vmatprep.subr.mxu0 0.0
    %482 = vmatpush1.msra.mxu0 0.0
    %483 = vmatprep.subr.mxu0 0.0
    %484 = vmatpush1.msra.mxu0 0.0
    %485 = vmatprep.subr.mxu0 0.0
    %486 = vmatpush1.msra.mxu0 0.0
    %487 = vmatprep.subr.mxu0 0.0
    %488 = vmatpush1.msra.mxu0 0.0
    %489 = vmatprep.subr.mxu0 0.0
    %490 = vmatpush1.msra.mxu0 0.0
    %491 = vmatprep.subr.mxu0 0.0
    %492 = vmatpush1.msra.mxu0 0.0
    %493 = vmatprep.subr.mxu0 0.0
    %494 = vmatpush1.msra.mxu0 0.0
    %495 = vmatprep.mubr.f32.mxu0 0.0
    %496 = vmatmul.mubr.f32.gmra.mrb[0].mxu0 %v429
    %v497 = vpop.f32.mrb[0].mxu0
    %v498 = vadd.f32 0.0, %v497
    %v499 = vpop.f32.mrb[0].mxu0
    %500 = vdwg.mxu0
    %v502 = vsel %vm172, %v498, 0
    %504 = vmatprep.subr.mxu0 0.0
    %505 = vmatpush1.msra.mxu0 %v79
    %506 = vmatprep.subr.mxu0 0.0
    %507 = vmatpush1.msra.mxu0 %v80
    %508 = vmatprep.subr.mxu0 0.0
    %509 = vmatpush1.msra.mxu0 0.0
    %510 = vmatprep.subr.mxu0 0.0
    %511 = vmatpush1.msra.mxu0 0.0
    %512 = vmatprep.subr.mxu0 0.0
    %513 = vmatpush1.msra.mxu0 0.0
    %514 = vmatprep.subr.mxu0 0.0
    %515 = vmatpush1.msra.mxu0 0.0
    %516 = vmatprep.subr.mxu0 0.0
    %517 = vmatpush1.msra.mxu0 0.0
    %518 = vmatprep.subr.mxu0 0.0
    %519 = vmatpush1.msra.mxu0 0.0
    %520 = vmatprep.subr.mxu0 0.0
    %521 = vmatpush1.msra.mxu0 0.0
    %522 = vmatprep.subr.mxu0 0.0
    %523 = vmatpush1.msra.mxu0 0.0
    %524 = vmatprep.subr.mxu0 0.0
    %525 = vmatpush1.msra.mxu0 0.0
    %526 = vmatprep.subr.mxu0 0.0
    %527 = vmatpush1.msra.mxu0 0.0
    %528 = vmatprep.subr.mxu0 0.0
    %529 = vmatpush1.msra.mxu0 0.0
    %530 = vmatprep.subr.mxu0 0.0
    %531 = vmatpush1.msra.mxu0 0.0
    %532 = vmatprep.subr.mxu0 0.0
    %533 = vmatpush1.msra.mxu0 0.0
    %534 = vmatprep.subr.mxu0 0.0
    %535 = vmatpush1.msra.mxu0 0.0
    %536 = vmatprep.subr.mxu0 0.0
    %537 = vmatpush1.msra.mxu0 0.0
    %538 = vmatprep.subr.mxu0 0.0
    %539 = vmatpush1.msra.mxu0 0.0
    %540 = vmatprep.subr.mxu0 0.0
    %541 = vmatpush1.msra.mxu0 0.0
    %542 = vmatprep.subr.mxu0 0.0
    %543 = vmatpush1.msra.mxu0 0.0
    %544 = vmatprep.subr.mxu0 0.0
    %545 = vmatpush1.msra.mxu0 0.0
    %546 = vmatprep.subr.mxu0 0.0
    %547 = vmatpush1.msra.mxu0 0.0
    %548 = vmatprep.subr.mxu0 0.0
    %549 = vmatpush1.msra.mxu0 0.0
    %550 = vmatprep.subr.mxu0 0.0
    %551 = vmatpush1.msra.mxu0 0.0
    %552 = vmatprep.subr.mxu0 0.0
    %553 = vmatpush1.msra.mxu0 0.0
    %554 = vmatprep.subr.mxu0 0.0
    %555 = vmatpush1.msra.mxu0 0.0
    %556 = vmatprep.subr.mxu0 0.0
    %557 = vmatpush1.msra.mxu0 0.0
    %558 = vmatprep.subr.mxu0 0.0
    %559 = vmatpush1.msra.mxu0 0.0
    %560 = vmatprep.subr.mxu0 0.0
    %561 = vmatpush1.msra.mxu0 0.0
    %562 = vmatprep.subr.mxu0 0.0
    %563 = vmatpush1.msra.mxu0 0.0
    %564 = vmatprep.subr.mxu0 0.0
    %565 = vmatpush1.msra.mxu0 0.0
    %566 = vmatprep.subr.mxu0 0.0
    %567 = vmatpush1.msra.mxu0 0.0
    %568 = vmatprep.mubr.f32.mxu0 0.0
    %569 = vmatmul.mubr.f32.gmra.mrb[0].mxu0 %v502
    %v570 = vpop.f32.mrb[0].mxu0
    %v571 = vadd.f32 0.0, %v570
    %v572 = vpop.f32.mrb[0].mxu0
    %573 = vdwg.mxu0
    %v575 = vsel %vm172, %v333, 0
    %577 = vmatprep.subr.mxu0 0.0
    %578 = vmatpush1.msra.mxu0 %v77
    %579 = vmatprep.subr.mxu0 0.0
    %580 = vmatpush1.msra.mxu0 %v78
    %581 = vmatprep.subr.mxu0 0.0
    %582 = vmatpush1.msra.mxu0 0.0
    %583 = vmatprep.subr.mxu0 0.0
    %584 = vmatpush1.msra.mxu0 0.0
    %585 = vmatprep.subr.mxu0 0.0
    %586 = vmatpush1.msra.mxu0 0.0
    %587 = vmatprep.subr.mxu0 0.0
    %588 = vmatpush1.msra.mxu0 0.0
    %589 = vmatprep.subr.mxu0 0.0
    %590 = vmatpush1.msra.mxu0 0.0
    %591 = vmatprep.subr.mxu0 0.0
    %592 = vmatpush1.msra.mxu0 0.0
    %593 = vmatprep.subr.mxu0 0.0
    %594 = vmatpush1.msra.mxu0 0.0
    %595 = vmatprep.subr.mxu0 0.0
    %596 = vmatpush1.msra.mxu0 0.0
    %597 = vmatprep.subr.mxu0 0.0
    %598 = vmatpush1.msra.mxu0 0.0
    %599 = vmatprep.subr.mxu0 0.0
    %600 = vmatpush1.msra.mxu0 0.0
    %601 = vmatprep.subr.mxu0 0.0
    %602 = vmatpush1.msra.mxu0 0.0
    %603 = vmatprep.subr.mxu0 0.0
    %604 = vmatpush1.msra.mxu0 0.0
    %605 = vmatprep.subr.mxu0 0.0
    %606 = vmatpush1.msra.mxu0 0.0
    %607 = vmatprep.subr.mxu0 0.0
    %608 = vmatpush1.msra.mxu0 0.0
    %609 = vmatprep.subr.mxu0 0.0
    %610 = vmatpush1.msra.mxu0 0.0
    %611 = vmatprep.subr.mxu0 0.0
    %612 = vmatpush1.msra.mxu0 0.0
    %613 = vmatprep.subr.mxu0 0.0
    %614 = vmatpush1.msra.mxu0 0.0
    %615 = vmatprep.subr.mxu0 0.0
    %616 = vmatpush1.msra.mxu0 0.0
    %617 = vmatprep.subr.mxu0 0.0
    %618 = vmatpush1.msra.mxu0 0.0
    %619 = vmatprep.subr.mxu0 0.0
    %620 = vmatpush1.msra.mxu0 0.0
    %621 = vmatprep.subr.mxu0 0.0
    %622 = vmatpush1.msra.mxu0 0.0
    %623 = vmatprep.subr.mxu0 0.0
    %624 = vmatpush1.msra.mxu0 0.0
    %625 = vmatprep.subr.mxu0 0.0
    %626 = vmatpush1.msra.mxu0 0.0
    %627 = vmatprep.subr.mxu0 0.0
    %628 = vmatpush1.msra.mxu0 0.0
    %629 = vmatprep.subr.mxu0 0.0
    %630 = vmatpush1.msra.mxu0 0.0
    %631 = vmatprep.subr.mxu0 0.0
    %632 = vmatpush1.msra.mxu0 0.0
    %633 = vmatprep.subr.mxu0 0.0
    %634 = vmatpush1.msra.mxu0 0.0
    %635 = vmatprep.subr.mxu0 0.0
    %636 = vmatpush1.msra.mxu0 0.0
    %637 = vmatprep.subr.mxu0 0.0
    %638 = vmatpush1.msra.mxu0 0.0
    %639 = vmatprep.subr.mxu0 0.0
    %640 = vmatpush1.msra.mxu0 0.0
    %641 = vmatprep.mubr.f32.mxu0 0.0
    %642 = vmatmul.mubr.f32.gmra.mrb[0].mxu0 %v575
    %v643 = vpop.f32.mrb[0].mxu0
    %v644 = vadd.f32 %v571, %v643
    %v645 = vpop.f32.mrb[0].mxu0
    %646 = vdwg.mxu0
    %647 = vrot.lane.b32.xlu0 %v168, 32
    %v648 = vpop.permute.xlu0 %647
    %649 = vrot.lane.b32.xlu0 %v158, 16
    %v650 = vpop.permute.xlu0 %649
    %v651 = vsel %vm172, %v648, 0
    %v653 = vsel %vm172, %v650, 0
    %655 = vmatprep.subr.mxu0 0.0
    %656 = vmatpush1.xpose.msra.mxu0 %v653
    %657 = vmatprep.subr.mxu0 0.0
    %658 = vmatpush1.xpose.msra.mxu0 0.0
    %659 = vmatprep.subr.mxu0 0.0
    %660 = vmatpush1.xpose.msra.mxu0 0.0
    %661 = vmatprep.subr.mxu0 0.0
    %662 = vmatpush1.xpose.msra.mxu0 0.0
    %663 = vmatprep.subr.mxu0 0.0
    %664 = vmatpush1.xpose.msra.mxu0 0.0
    %665 = vmatprep.subr.mxu0 0.0
    %666 = vmatpush1.xpose.msra.mxu0 0.0
    %667 = vmatprep.subr.mxu0 0.0
    %668 = vmatpush1.xpose.msra.mxu0 0.0
    %669 = vmatprep.subr.mxu0 0.0
    %670 = vmatpush1.xpose.msra.mxu0 0.0
    %671 = vmatprep.subr.mxu0 0.0
    %672 = vmatpush1.xpose.msra.mxu0 0.0
    %673 = vmatprep.subr.mxu0 0.0
    %674 = vmatpush1.xpose.msra.mxu0 0.0
    %675 = vmatprep.subr.mxu0 0.0
    %676 = vmatpush1.xpose.msra.mxu0 0.0
    %677 = vmatprep.subr.mxu0 0.0
    %678 = vmatpush1.xpose.msra.mxu0 0.0
    %679 = vmatprep.subr.mxu0 0.0
    %680 = vmatpush1.xpose.msra.mxu0 0.0
    %681 = vmatprep.subr.mxu0 0.0
    %682 = vmatpush1.xpose.msra.mxu0 0.0
    %683 = vmatprep.subr.mxu0 0.0
    %684 = vmatpush1.xpose.msra.mxu0 0.0
    %685 = vmatprep.subr.mxu0 0.0
    %686 = vmatpush1.xpose.msra.mxu0 0.0
    %687 = vmatprep.subr.mxu0 0.0
    %688 = vmatpush1.xpose.msra.mxu0 0.0
    %689 = vmatprep.subr.mxu0 0.0
    %690 = vmatpush1.xpose.msra.mxu0 0.0
    %691 = vmatprep.subr.mxu0 0.0
    %692 = vmatpush1.xpose.msra.mxu0 0.0
    %693 = vmatprep.subr.mxu0 0.0
    %694 = vmatpush1.xpose.msra.mxu0 0.0
    %695 = vmatprep.subr.mxu0 0.0
    %696 = vmatpush1.xpose.msra.mxu0 0.0
    %697 = vmatprep.subr.mxu0 0.0
    %698 = vmatpush1.xpose.msra.mxu0 0.0
    %699 = vmatprep.subr.mxu0 0.0
    %700 = vmatpush1.xpose.msra.mxu0 0.0
    %701 = vmatprep.subr.mxu0 0.0
    %702 = vmatpush1.xpose.msra.mxu0 0.0
    %703 = vmatprep.subr.mxu0 0.0
    %704 = vmatpush1.xpose.msra.mxu0 0.0
    %705 = vmatprep.subr.mxu0 0.0
    %706 = vmatpush1.xpose.msra.mxu0 0.0
    %707 = vmatprep.subr.mxu0 0.0
    %708 = vmatpush1.xpose.msra.mxu0 0.0
    %709 = vmatprep.subr.mxu0 0.0
    %710 = vmatpush1.xpose.msra.mxu0 0.0
    %711 = vmatprep.subr.mxu0 0.0
    %712 = vmatpush1.xpose.msra.mxu0 0.0
    %713 = vmatprep.subr.mxu0 0.0
    %714 = vmatpush1.xpose.msra.mxu0 0.0
    %715 = vmatprep.subr.mxu0 0.0
    %716 = vmatpush1.xpose.msra.mxu0 0.0
    %717 = vmatprep.subr.mxu0 0.0
    %718 = vmatpush1.xpose.msra.mxu0 0.0
    %719 = vmatprep.mubr.f32.mxu0 0.0
    %720 = vmatmul.mubr.f32.gmra.mrb[0].mxu0 %v651
    %v721 = vpop.f32.mrb[0].mxu0
    %v722 = vadd.f32 0.0, %v721
    %v723 = vpop.f32.mrb[0].mxu0
    %724 = vdwg.mxu0
    %v725 = vsel %vm248, %v722, -inf
    %726 = vmax.xlane.f32.xlu0 %v725
    %v727 = vpop.xlane.xlu0 %726
    %v728 = vsub.f32 %v722, %v727
    %v729 = vmul.f32 %v728, 1.442695
    %v730 = vpow.pop %v729
    %v731 = vsel %vm248, %v730, 0.0
    %732 = vadd.xlane.f32.xlu0 %v731
    %v733 = vpop.xlane.xlu0 %732
    %v734 = vrcp.pop %v733
    %v735 = vmul.f32 %v730, %v734
    %v737 = vsel %vm248, %v735, 0
    %739 = vmatprep.subr.mxu0 0.0
    %740 = vmatpush1.msra.mxu0 %v160
    %741 = vmatprep.subr.mxu0 0.0
    %742 = vmatpush1.msra.mxu0 0.0
    %743 = vmatprep.subr.mxu0 0.0
    %744 = vmatpush1.msra.mxu0 0.0
    %745 = vmatprep.subr.mxu0 0.0
    %746 = vmatpush1.msra.mxu0 0.0
    %747 = vmatprep.subr.mxu0 0.0
    %748 = vmatpush1.msra.mxu0 0.0
    %749 = vmatprep.subr.mxu0 0.0
    %750 = vmatpush1.msra.mxu0 0.0
    %751 = vmatprep.subr.mxu0 0.0
    %752 = vmatpush1.msra.mxu0 0.0
    %753 = vmatprep.subr.mxu0 0.0
    %754 = vmatpush1.msra.mxu0 0.0
    %755 = vmatprep.subr.mxu0 0.0
    %756 = vmatpush1.msra.mxu0 0.0
    %757 = vmatprep.subr.mxu0 0.0
    %758 = vmatpush1.msra.mxu0 0.0
    %759 = vmatprep.subr.mxu0 0.0
    %760 = vmatpush1.msra.mxu0 0.0
    %761 = vmatprep.subr.mxu0 0.0
    %762 = vmatpush1.msra.mxu0 0.0
    %763 = vmatprep.subr.mxu0 0.0
    %764 = vmatpush1.msra.mxu0 0.0
    %765 = vmatprep.subr.mxu0 0.0
    %766 = vmatpush1.msra.mxu0 0.0
    %767 = vmatprep.subr.mxu0 0.0
    %768 = vmatpush1.msra.mxu0 0.0
    %769 = vmatprep.subr.mxu0 0.0
    %770 = vmatpush1.msra.mxu0 0.0
    %771 = vmatprep.subr.mxu0 0.0
    %772 = vmatpush1.msra.mxu0 0.0
    %773 = vmatprep.subr.mxu0 0.0
    %774 = vmatpush1.msra.mxu0 0.0
    %775 = vmatprep.subr.mxu0 0.0
    %776 = vmatpush1.msra.mxu0 0.0
    %777 = vmatprep.subr.mxu0 0.0
    %778 = vmatpush1.msra.mxu0 0.0
    %779 = vmatprep.subr.mxu0 0.0
    %780 = vmatpush1.msra.mxu0 0.0
    %781 = vmatprep.subr.mxu0 0.0
    %782 = vmatpush1.msra.mxu0 0.0
    %783 = vmatprep.subr.mxu0 0.0
    %784 = vmatpush1.msra.mxu0 0.0
    %785 = vmatprep.subr.mxu0 0.0
    %786 = vmatpush1.msra.mxu0 0.0
    %787 = vmatprep.subr.mxu0 0.0
    %788 = vmatpush1.msra.mxu0 0.0
    %789 = vmatprep.subr.mxu0 0.0
    %790 = vmatpush1.msra.mxu0 0.0
    %791 = vmatprep.subr.mxu0 0.0
    %792 = vmatpush1.msra.mxu0 0.0
    %793 = vmatprep.subr.mxu0 0.0
    %794 = vmatpush1.msra.mxu0 0.0
    %795 = vmatprep.subr.mxu0 0.0
    %796 = vmatpush1.msra.mxu0 0.0
    %797 = vmatprep.subr.mxu0 0.0
    %798 = vmatpush1.msra.mxu0 0.0
    %799 = vmatprep.subr.mxu0 0.0
    %800 = vmatpush1.msra.mxu0 0.0
    %801 = vmatprep.subr.mxu0 0.0
    %802 = vmatpush1.msra.mxu0 0.0
    %803 = vmatprep.mubr.f32.mxu0 0.0
    %804 = vmatmul.mubr.f32.gmra.mrb[0].mxu0 %v737
    %v805 = vpop.f32.mrb[0].mxu0
    %v806 = vadd.f32 0.0, %v805
    %v807 = vpop.f32.mrb[0].mxu0
    %808 = vdwg.mxu0
    %v810 = vsel %vm172, %v806, 0
    %812 = vmatprep.subr.mxu0 0.0
    %813 = vmatpush1.msra.mxu0 %v81
    %814 = vmatprep.subr.mxu0 0.0
    %815 = vmatpush1.msra.mxu0 %v82
    %816 = vmatprep.subr.mxu0 0.0
    %817 = vmatpush1.msra.mxu0 0.0
    %818 = vmatprep.subr.mxu0 0.0
    %819 = vmatpush1.msra.mxu0 0.0
    %820 = vmatprep.subr.mxu0 0.0
    %821 = vmatpush1.msra.mxu0 0.0
    %822 = vmatprep.subr.mxu0 0.0
    %823 = vmatpush1.msra.mxu0 0.0
    %824 = vmatprep.subr.mxu0 0.0
    %825 = vmatpush1.msra.mxu0 0.0
    %826 = vmatprep.subr.mxu0 0.0
    %827 = vmatpush1.msra.mxu0 0.0
    %828 = vmatprep.subr.mxu0 0.0
    %829 = vmatpush1.msra.mxu0 0.0
    %830 = vmatprep.subr.mxu0 0.0
    %831 = vmatpush1.msra.mxu0 0.0
    %832 = vmatprep.subr.mxu0 0.0
    %833 = vmatpush1.msra.mxu0 0.0
    %834 = vmatprep.subr.mxu0 0.0
    %835 = vmatpush1.msra.mxu0 0.0
    %836 = vmatprep.subr.mxu0 0.0
    %837 = vmatpush1.msra.mxu0 0.0
    %838 = vmatprep.subr.mxu0 0.0
    %839 = vmatpush1.msra.mxu0 0.0
    %840 = vmatprep.subr.mxu0 0.0
    %841 = vmatpush1.msra.mxu0 0.0
    %842 = vmatprep.subr.mxu0 0.0
    %843 = vmatpush1.msra.mxu0 0.0
    %844 = vmatprep.subr.mxu0 0.0
    %845 = vmatpush1.msra.mxu0 0.0
    %846 = vmatprep.subr.mxu0 0.0
    %847 = vmatpush1.msra.mxu0 0.0
    %848 = vmatprep.subr.mxu0 0.0
    %849 = vmatpush1.msra.mxu0 0.0
    %850 = vmatprep.subr.mxu0 0.0
    %851 = vmatpush1.msra.mxu0 0.0
    %852 = vmatprep.subr.mxu0 0.0
    %853 = vmatpush1.msra.mxu0 0.0
    %854 = vmatprep.subr.mxu0 0.0
    %855 = vmatpush1.msra.mxu0 0.0
    %856 = vmatprep.subr.mxu0 0.0
    %857 = vmatpush1.msra.mxu0 0.0
    %858 = vmatprep.subr.mxu0 0.0
    %859 = vmatpush1.msra.mxu0 0.0
    %860 = vmatprep.subr.mxu0 0.0
    %861 = vmatpush1.msra.mxu0 0.0
    %862 = vmatprep.subr.mxu0 0.0
    %863 = vmatpush1.msra.mxu0 0.0
    %864 = vmatprep.subr.mxu0 0.0
    %865 = vmatpush1.msra.mxu0 0.0
    %866 = vmatprep.subr.mxu0 0.0
    %867 = vmatpush1.msra.mxu0 0.0
    %868 = vmatprep.subr.mxu0 0.0
    %869 = vmatpush1.msra.mxu0 0.0
    %870 = vmatprep.subr.mxu0 0.0
    %871 = vmatpush1.msra.mxu0 0.0
    %872 = vmatprep.subr.mxu0 0.0
    %873 = vmatpush1.msra.mxu0 0.0
    %874 = vmatprep.subr.mxu0 0.0
    %875 = vmatpush1.msra.mxu0 0.0
    %876 = vmatprep.mubr.f32.mxu0 0.0
    %877 = vmatmul.mubr.f32.gmra.mrb[0].mxu0 %v810
    %v878 = vpop.f32.mrb[0].mxu0
    %v879 = vadd.f32 0.0, %v878
    %v880 = vpop.f32.mrb[0].mxu0
    %881 = vdwg.mxu0
    %v882 = vadd.f32 %v644, %v879
    %v883 = vmul.f32 %v160, 0.25
    %885 = vrot.lane.b32.xlu0 %v883, 112
    %v886 = vpop.permute.xlu0 %885
    %888 = vrot.lane.b32.xlu0 %v160, 96
    %v889 = vpop.permute.xlu0 %888
    %v890 = vsel %vm172, %v886, 0
    %v892 = vsel %vm172, %v889, 0
    %894 = vmatprep.subr.mxu0 0.0
    %895 = vmatpush1.xpose.msra.mxu0 %v892
    %896 = vmatprep.subr.mxu0 0.0
    %897 = vmatpush1.xpose.msra.mxu0 0.0
    %898 = vmatprep.subr.mxu0 0.0
    %899 = vmatpush1.xpose.msra.mxu0 0.0
    %900 = vmatprep.subr.mxu0 0.0
    %901 = vmatpush1.xpose.msra.mxu0 0.0
    %902 = vmatprep.subr.mxu0 0.0
    %903 = vmatpush1.xpose.msra.mxu0 0.0
    %904 = vmatprep.subr.mxu0 0.0
    %905 = vmatpush1.xpose.msra.mxu0 0.0
    %906 = vmatprep.subr.mxu0 0.0
    %907 = vmatpush1.xpose.msra.mxu0 0.0
    %908 = vmatprep.subr.mxu0 0.0
    %909 = vmatpush1.xpose.msra.mxu0 0.0
    %910 = vmatprep.subr.mxu0 0.0
    %911 = vmatpush1.xpose.msra.mxu0 0.0
    %912 = vmatprep.subr.mxu0 0.0
    %913 = vmatpush1.xpose.msra.mxu0 0.0
    %914 = vmatprep.subr.mxu0 0.0
    %915 = vmatpush1.xpose.msra.mxu0 0.0
    %916 = vmatprep.subr.mxu0 0.0
    %917 = vmatpush1.xpose.msra.mxu0 0.0
    %918 = vmatprep.subr.mxu0 0.0
    %919 = vmatpush1.xpose.msra.mxu0 0.0
    %920 = vmatprep.subr.mxu0 0.0
    %921 = vmatpush1.xpose.msra.mxu0 0.0
    %922 = vmatprep.subr.mxu0 0.0
    %923 = vmatpush1.xpose.msra.mxu0 0.0
    %924 = vmatprep.subr.mxu0 0.0
    %925 = vmatpush1.xpose.msra.mxu0 0.0
    %926 = vmatprep.subr.mxu0 0.0
    %927 = vmatpush1.xpose.msra.mxu0 0.0
    %928 = vmatprep.subr.mxu0 0.0
    %929 = vmatpush1.xpose.msra.mxu0 0.0
    %930 = vmatprep.subr.mxu0 0.0
    %931 = vmatpush1.xpose.msra.mxu0 0.0
    %932 = vmatprep.subr.mxu0 0.0
    %933 = vmatpush1.xpose.msra.mxu0 0.0
    %934 = vmatprep.subr.mxu0 0.0
    %935 = vmatpush1.xpose.msra.mxu0 0.0
    %936 = vmatprep.subr.mxu0 0.0
    %937 = vmatpush1.xpose.msra.mxu0 0.0
    %938 = vmatprep.subr.mxu0 0.0
    %939 = vmatpush1.xpose.msra.mxu0 0.0
    %940 = vmatprep.subr.mxu0 0.0
    %941 = vmatpush1.xpose.msra.mxu0 0.0
    %942 = vmatprep.subr.mxu0 0.0
    %943 = vmatpush1.xpose.msra.mxu0 0.0
    %944 = vmatprep.subr.mxu0 0.0
    %945 = vmatpush1.xpose.msra.mxu0 0.0
    %946 = vmatprep.subr.mxu0 0.0
    %947 = vmatpush1.xpose.msra.mxu0 0.0
    %948 = vmatprep.subr.mxu0 0.0
    %949 = vmatpush1.xpose.msra.mxu0 0.0
    %950 = vmatprep.subr.mxu0 0.0
    %951 = vmatpush1.xpose.msra.mxu0 0.0
    %952 = vmatprep.subr.mxu0 0.0
    %953 = vmatpush1.xpose.msra.mxu0 0.0
    %954 = vmatprep.subr.mxu0 0.0
    %955 = vmatpush1.xpose.msra.mxu0 0.0
    %956 = vmatprep.subr.mxu0 0.0
    %957 = vmatpush1.xpose.msra.mxu0 0.0
    %958 = vmatprep.mubr.f32.mxu0 0.0
    %959 = vmatmul.mubr.f32.gmra.mrb[0].mxu0 %v890
    %v960 = vpop.f32.mrb[0].mxu0
    %v961 = vadd.f32 0.0, %v960
    %v962 = vpop.f32.mrb[0].mxu0
    %963 = vdwg.mxu0
    %v964 = vsel %vm248, %v961, -inf
    %965 = vmax.xlane.f32.xlu0 %v964
    %v966 = vpop.xlane.xlu0 %965
    %v967 = vsub.f32 %v961, %v966
    %v968 = vmul.f32 %v967, 1.442695
    %v969 = vpow.pop %v968
    %v970 = vsel %vm248, %v969, 0.0
    %971 = vadd.xlane.f32.xlu0 %v970
    %v972 = vpop.xlane.xlu0 %971
    %v973 = vrcp.pop %v972
    %v974 = vmul.f32 %v969, %v973
    %975 = vrot.lane.b32.xlu0 %v160, 80
    %v976 = vpop.permute.xlu0 %975
    %v979 = vsel %vm248, %v974, 0
    %981 = vmatprep.subr.mxu0 0.0
    %982 = vmatpush1.msra.mxu0 %v976
    %983 = vmatprep.subr.mxu0 0.0
    %984 = vmatpush1.msra.mxu0 0.0
    %985 = vmatprep.subr.mxu0 0.0
    %986 = vmatpush1.msra.mxu0 0.0
    %987 = vmatprep.subr.mxu0 0.0
    %988 = vmatpush1.msra.mxu0 0.0
    %989 = vmatprep.subr.mxu0 0.0
    %990 = vmatpush1.msra.mxu0 0.0
    %991 = vmatprep.subr.mxu0 0.0
    %992 = vmatpush1.msra.mxu0 0.0
    %993 = vmatprep.subr.mxu0 0.0
    %994 = vmatpush1.msra.mxu0 0.0
    %995 = vmatprep.subr.mxu0 0.0
    %996 = vmatpush1.msra.mxu0 0.0
    %997 = vmatprep.subr.mxu0 0.0
    %998 = vmatpush1.msra.mxu0 0.0
    %999 = vmatprep.subr.mxu0 0.0
    %1000 = vmatpush1.msra.mxu0 0.0
    %1001 = vmatprep.subr.mxu0 0.0
    %1002 = vmatpush1.msra.mxu0 0.0
    %1003 = vmatprep.subr.mxu0 0.0
    %1004 = vmatpush1.msra.mxu0 0.0
    %1005 = vmatprep.subr.mxu0 0.0
    %1006 = vmatpush1.msra.mxu0 0.0
    %1007 = vmatprep.subr.mxu0 0.0
    %1008 = vmatpush1.msra.mxu0 0.0
    %1009 = vmatprep.subr.mxu0 0.0
    %1010 = vmatpush1.msra.mxu0 0.0
    %1011 = vmatprep.subr.mxu0 0.0
    %1012 = vmatpush1.msra.mxu0 0.0
    %1013 = vmatprep.subr.mxu0 0.0
    %1014 = vmatpush1.msra.mxu0 0.0
    %1015 = vmatprep.subr.mxu0 0.0
    %1016 = vmatpush1.msra.mxu0 0.0
    %1017 = vmatprep.subr.mxu0 0.0
    %1018 = vmatpush1.msra.mxu0 0.0
    %1019 = vmatprep.subr.mxu0 0.0
    %1020 = vmatpush1.msra.mxu0 0.0
    %1021 = vmatprep.subr.mxu0 0.0
    %1022 = vmatpush1.msra.mxu0 0.0
    %1023 = vmatprep.subr.mxu0 0.0
    %1024 = vmatpush1.msra.mxu0 0.0
    %1025 = vmatprep.subr.mxu0 0.0
    %1026 = vmatpush1.msra.mxu0 0.0
    %1027 = vmatprep.subr.mxu0 0.0
    %1028 = vmatpush1.msra.mxu0 0.0
    %1029 = vmatprep.subr.mxu0 0.0
    %1030 = vmatpush1.msra.mxu0 0.0
    %1031 = vmatprep.subr.mxu0 0.0
    %1032 = vmatpush1.msra.mxu0 0.0
    %1033 = vmatprep.subr.mxu0 0.0
    %1034 = vmatpush1.msra.mxu0 0.0
    %1035 = vmatprep.subr.mxu0 0.0
    %1036 = vmatpush1.msra.mxu0 0.0
    %1037 = vmatprep.subr.mxu0 0.0
    %1038 = vmatpush1.msra.mxu0 0.0
    %1039 = vmatprep.subr.mxu0 0.0
    %1040 = vmatpush1.msra.mxu0 0.0
    %1041 = vmatprep.subr.mxu0 0.0
    %1042 = vmatpush1.msra.mxu0 0.0
    %1043 = vmatprep.subr.mxu0 0.0
    %1044 = vmatpush1.msra.mxu0 0.0
    %1045 = vmatprep.mubr.f32.mxu0 0.0
    %1046 = vmatmul.mubr.f32.gmra.mrb[0].mxu0 %v979
    %v1047 = vpop.f32.mrb[0].mxu0
    %v1048 = vadd.f32 0.0, %v1047
    %v1049 = vpop.f32.mrb[0].mxu0
    %1050 = vdwg.mxu0
    %v1052 = vsel %vm172, %v1048, 0
    %1054 = vmatprep.subr.mxu0 0.0
    %1055 = vmatpush1.msra.mxu0 %v83
    %1056 = vmatprep.subr.mxu0 0.0
    %1057 = vmatpush1.msra.mxu0 %v84
    %1058 = vmatprep.subr.mxu0 0.0
    %1059 = vmatpush1.msra.mxu0 0.0
    %1060 = vmatprep.subr.mxu0 0.0
    %1061 = vmatpush1.msra.mxu0 0.0
    %1062 = vmatprep.subr.mxu0 0.0
    %1063 = vmatpush1.msra.mxu0 0.0
    %1064 = vmatprep.subr.mxu0 0.0
    %1065 = vmatpush1.msra.mxu0 0.0
    %1066 = vmatprep.subr.mxu0 0.0
    %1067 = vmatpush1.msra.mxu0 0.0
    %1068 = vmatprep.subr.mxu0 0.0
    %1069 = vmatpush1.msra.mxu0 0.0
    %1070 = vmatprep.subr.mxu0 0.0
    %1071 = vmatpush1.msra.mxu0 0.0
    %1072 = vmatprep.subr.mxu0 0.0
    %1073 = vmatpush1.msra.mxu0 0.0
    %1074 = vmatprep.subr.mxu0 0.0
    %1075 = vmatpush1.msra.mxu0 0.0
    %1076 = vmatprep.subr.mxu0 0.0
    %1077 = vmatpush1.msra.mxu0 0.0
    %1078 = vmatprep.subr.mxu0 0.0
    %1079 = vmatpush1.msra.mxu0 0.0
    %1080 = vmatprep.subr.mxu0 0.0
    %1081 = vmatpush1.msra.mxu0 0.0
    %1082 = vmatprep.subr.mxu0 0.0
    %1083 = vmatpush1.msra.mxu0 0.0
    %1084 = vmatprep.subr.mxu0 0.0
    %1085 = vmatpush1.msra.mxu0 0.0
    %1086 = vmatprep.subr.mxu0 0.0
    %1087 = vmatpush1.msra.mxu0 0.0
    %1088 = vmatprep.subr.mxu0 0.0
    %1089 = vmatpush1.msra.mxu0 0.0
    %1090 = vmatprep.subr.mxu0 0.0
    %1091 = vmatpush1.msra.mxu0 0.0
    %1092 = vmatprep.subr.mxu0 0.0
    %1093 = vmatpush1.msra.mxu0 0.0
    %1094 = vmatprep.subr.mxu0 0.0
    %1095 = vmatpush1.msra.mxu0 0.0
    %1096 = vmatprep.subr.mxu0 0.0
    %1097 = vmatpush1.msra.mxu0 0.0
    %1098 = vmatprep.subr.mxu0 0.0
    %1099 = vmatpush1.msra.mxu0 0.0
    %1100 = vmatprep.subr.mxu0 0.0
    %1101 = vmatpush1.msra.mxu0 0.0
    %1102 = vmatprep.subr.mxu0 0.0
    %1103 = vmatpush1.msra.mxu0 0.0
    %1104 = vmatprep.subr.mxu0 0.0
    %1105 = vmatpush1.msra.mxu0 0.0
    %1106 = vmatprep.subr.mxu0 0.0
    %1107 = vmatpush1.msra.mxu0 0.0
    %1108 = vmatprep.subr.mxu0 0.0
    %1109 = vmatpush1.msra.mxu0 0.0
    %1110 = vmatprep.subr.mxu0 0.0
    %1111 = vmatpush1.msra.mxu0 0.0
    %1112 = vmatprep.subr.mxu0 0.0
    %1113 = vmatpush1.msra.mxu0 0.0
    %1114 = vmatprep.subr.mxu0 0.0
    %1115 = vmatpush1.msra.mxu0 0.0
    %1116 = vmatprep.subr.mxu0 0.0
    %1117 = vmatpush1.msra.mxu0 0.0
    %1118 = vmatprep.mubr.f32.mxu0 0.0
    %1119 = vmatmul.mubr.f32.gmra.mrb[0].mxu0 %v1052
    %v1120 = vpop.f32.mrb[0].mxu0
    %v1121 = vadd.f32 0.0, %v1120
    %v1122 = vpop.f32.mrb[0].mxu0
    %1123 = vdwg.mxu0
    %v1124 = vadd.f32 %v882, %v1121
    %1125 = vst.msk [vmem:[#allocation2] sm:$0xff] %vm23, %v1124
    %v1126 = vmul.f32 %v164, 0.25
    %1128 = vrot.lane.b32.xlu0 %v164, 112
    %v1129 = vpop.permute.xlu0 %1128
    %v1131 = vsel %vm172, %v1126, 0
    %v1133 = vsel %vm172, %v1129, 0
    %1135 = vmatprep.subr.mxu0 0.0
    %1136 = vmatpush1.xpose.msra.mxu0 %v1133
    %1137 = vmatprep.subr.mxu0 0.0
    %1138 = vmatpush1.xpose.msra.mxu0 0.0
    %1139 = vmatprep.subr.mxu0 0.0
    %1140 = vmatpush1.xpose.msra.mxu0 0.0
    %1141 = vmatprep.subr.mxu0 0.0
    %1142 = vmatpush1.xpose.msra.mxu0 0.0
    %1143 = vmatprep.subr.mxu0 0.0
    %1144 = vmatpush1.xpose.msra.mxu0 0.0
    %1145 = vmatprep.subr.mxu0 0.0
    %1146 = vmatpush1.xpose.msra.mxu0 0.0
    %1147 = vmatprep.subr.mxu0 0.0
    %1148 = vmatpush1.xpose.msra.mxu0 0.0
    %1149 = vmatprep.subr.mxu0 0.0
    %1150 = vmatpush1.xpose.msra.mxu0 0.0
    %1151 = vmatprep.subr.mxu0 0.0
    %1152 = vmatpush1.xpose.msra.mxu0 0.0
    %1153 = vmatprep.subr.mxu0 0.0
    %1154 = vmatpush1.xpose.msra.mxu0 0.0
    %1155 = vmatprep.subr.mxu0 0.0
    %1156 = vmatpush1.xpose.msra.mxu0 0.0
    %1157 = vmatprep.subr.mxu0 0.0
    %1158 = vmatpush1.xpose.msra.mxu0 0.0
    %1159 = vmatprep.subr.mxu0 0.0
    %1160 = vmatpush1.xpose.msra.mxu0 0.0
    %1161 = vmatprep.subr.mxu0 0.0
    %1162 = vmatpush1.xpose.msra.mxu0 0.0
    %1163 = vmatprep.subr.mxu0 0.0
    %1164 = vmatpush1.xpose.msra.mxu0 0.0
    %1165 = vmatprep.subr.mxu0 0.0
    %1166 = vmatpush1.xpose.msra.mxu0 0.0
    %1167 = vmatprep.subr.mxu0 0.0
    %1168 = vmatpush1.xpose.msra.mxu0 0.0
    %1169 = vmatprep.subr.mxu0 0.0
    %1170 = vmatpush1.xpose.msra.mxu0 0.0
    %1171 = vmatprep.subr.mxu0 0.0
    %1172 = vmatpush1.xpose.msra.mxu0 0.0
    %1173 = vmatprep.subr.mxu0 0.0
    %1174 = vmatpush1.xpose.msra.mxu0 0.0
    %1175 = vmatprep.subr.mxu0 0.0
    %1176 = vmatpush1.xpose.msra.mxu0 0.0
    %1177 = vmatprep.subr.mxu0 0.0
    %1178 = vmatpush1.xpose.msra.mxu0 0.0
    %1179 = vmatprep.subr.mxu0 0.0
    %1180 = vmatpush1.xpose.msra.mxu0 0.0
    %1181 = vmatprep.subr.mxu0 0.0
    %1182 = vmatpush1.xpose.msra.mxu0 0.0
    %1183 = vmatprep.subr.mxu0 0.0
    %1184 = vmatpush1.xpose.msra.mxu0 0.0
    %1185 = vmatprep.subr.mxu0 0.0
    %1186 = vmatpush1.xpose.msra.mxu0 0.0
    %1187 = vmatprep.subr.mxu0 0.0
    %1188 = vmatpush1.xpose.msra.mxu0 0.0
    %1189 = vmatprep.subr.mxu0 0.0
    %1190 = vmatpush1.xpose.msra.mxu0 0.0
    %1191 = vmatprep.subr.mxu0 0.0
    %1192 = vmatpush1.xpose.msra.mxu0 0.0
    %1193 = vmatprep.subr.mxu0 0.0
    %1194 = vmatpush1.xpose.msra.mxu0 0.0
    %1195 = vmatprep.subr.mxu0 0.0
    %1196 = vmatpush1.xpose.msra.mxu0 0.0
    %1197 = vmatprep.subr.mxu0 0.0
    %1198 = vmatpush1.xpose.msra.mxu0 0.0
    %1199 = vmatprep.mubr.f32.mxu0 0.0
    %1200 = vmatmul.mubr.f32.gmra.mrb[0].mxu0 %v1131
    %v1201 = vpop.f32.mrb[0].mxu0
    %v1202 = vadd.f32 0.0, %v1201
    %v1203 = vpop.f32.mrb[0].mxu0
    %1204 = vdwg.mxu0
    %v1205 = vsel %vm248, %v1202, -inf
    %1206 = vmax.xlane.f32.xlu0 %v1205
    %v1207 = vpop.xlane.xlu0 %1206
    %v1208 = vsub.f32 %v1202, %v1207
    %v1209 = vmul.f32 %v1208, 1.442695
    %v1210 = vpow.pop %v1209
    %v1211 = vsel %vm248, %v1210, 0.0
    %1212 = vadd.xlane.f32.xlu0 %v1211
    %v1213 = vpop.xlane.xlu0 %1212
    %v1214 = vrcp.pop %v1213
    %v1215 = vmul.f32 %v1210, %v1214
    %1216 = vrot.lane.b32.xlu0 %v164, 96
    %v1217 = vpop.permute.xlu0 %1216
    %v1220 = vsel %vm248, %v1215, 0
    %1222 = vmatprep.subr.mxu0 0.0
    %1223 = vmatpush1.msra.mxu0 %v1217
    %1224 = vmatprep.subr.mxu0 0.0
    %1225 = vmatpush1.msra.mxu0 0.0
    %1226 = vmatprep.subr.mxu0 0.0
    %1227 = vmatpush1.msra.mxu0 0.0
    %1228 = vmatprep.subr.mxu0 0.0
    %1229 = vmatpush1.msra.mxu0 0.0
    %1230 = vmatprep.subr.mxu0 0.0
    %1231 = vmatpush1.msra.mxu0 0.0
    %1232 = vmatprep.subr.mxu0 0.0
    %1233 = vmatpush1.msra.mxu0 0.0
    %1234 = vmatprep.subr.mxu0 0.0
    %1235 = vmatpush1.msra.mxu0 0.0
    %1236 = vmatprep.subr.mxu0 0.0
    %1237 = vmatpush1.msra.mxu0 0.0
    %1238 = vmatprep.subr.mxu0 0.0
    %1239 = vmatpush1.msra.mxu0 0.0
    %1240 = vmatprep.subr.mxu0 0.0
    %1241 = vmatpush1.msra.mxu0 0.0
    %1242 = vmatprep.subr.mxu0 0.0
    %1243 = vmatpush1.msra.mxu0 0.0
    %1244 = vmatprep.subr.mxu0 0.0
    %1245 = vmatpush1.msra.mxu0 0.0
    %1246 = vmatprep.subr.mxu0 0.0
    %1247 = vmatpush1.msra.mxu0 0.0
    %1248 = vmatprep.subr.mxu0 0.0
    %1249 = vmatpush1.msra.mxu0 0.0
    %1250 = vmatprep.subr.mxu0 0.0
    %1251 = vmatpush1.msra.mxu0 0.0
    %1252 = vmatprep.subr.mxu0 0.0
    %1253 = vmatpush1.msra.mxu0 0.0
    %1254 = vmatprep.subr.mxu0 0.0
    %1255 = vmatpush1.msra.mxu0 0.0
    %1256 = vmatprep.subr.mxu0 0.0
    %1257 = vmatpush1.msra.mxu0 0.0
    %1258 = vmatprep.subr.mxu0 0.0
    %1259 = vmatpush1.msra.mxu0 0.0
    %1260 = vmatprep.subr.mxu0 0.0
    %1261 = vmatpush1.msra.mxu0 0.0
    %1262 = vmatprep.subr.mxu0 0.0
    %1263 = vmatpush1.msra.mxu0 0.0
    %1264 = vmatprep.subr.mxu0 0.0
    %1265 = vmatpush1.msra.mxu0 0.0
    %1266 = vmatprep.subr.mxu0 0.0
    %1267 = vmatpush1.msra.mxu0 0.0
    %1268 = vmatprep.subr.mxu0 0.0
    %1269 = vmatpush1.msra.mxu0 0.0
    %1270 = vmatprep.subr.mxu0 0.0
    %1271 = vmatpush1.msra.mxu0 0.0
    %1272 = vmatprep.subr.mxu0 0.0
    %1273 = vmatpush1.msra.mxu0 0.0
    %1274 = vmatprep.subr.mxu0 0.0
    %1275 = vmatpush1.msra.mxu0 0.0
    %1276 = vmatprep.subr.mxu0 0.0
    %1277 = vmatpush1.msra.mxu0 0.0
    %1278 = vmatprep.subr.mxu0 0.0
    %1279 = vmatpush1.msra.mxu0 0.0
    %1280 = vmatprep.subr.mxu0 0.0
    %1281 = vmatpush1.msra.mxu0 0.0
    %1282 = vmatprep.subr.mxu0 0.0
    %1283 = vmatpush1.msra.mxu0 0.0
    %1284 = vmatprep.subr.mxu0 0.0
    %1285 = vmatpush1.msra.mxu0 0.0
    %1286 = vmatprep.mubr.f32.mxu0 0.0
    %1287 = vmatmul.mubr.f32.gmra.mrb[0].mxu0 %v1220
    %v1288 = vpop.f32.mrb[0].mxu0
    %v1289 = vadd.f32 0.0, %v1288
    %v1290 = vpop.f32.mrb[0].mxu0
    %1291 = vdwg.mxu0
    %1292 = vrot.lane.b32.xlu0 %v1126, 80
    %v1293 = vpop.permute.xlu0 %1292
    %1294 = vrot.lane.b32.xlu0 %v164, 64
    %v1295 = vpop.permute.xlu0 %1294
    %v1296 = vsel %vm172, %v1293, 0
    %v1298 = vsel %vm172, %v1295, 0
    %1300 = vmatprep.subr.mxu0 0.0
    %1301 = vmatpush1.xpose.msra.mxu0 %v1298
    %1302 = vmatprep.subr.mxu0 0.0
    %1303 = vmatpush1.xpose.msra.mxu0 0.0
    %1304 = vmatprep.subr.mxu0 0.0
    %1305 = vmatpush1.xpose.msra.mxu0 0.0
    %1306 = vmatprep.subr.mxu0 0.0
    %1307 = vmatpush1.xpose.msra.mxu0 0.0
    %1308 = vmatprep.subr.mxu0 0.0
    %1309 = vmatpush1.xpose.msra.mxu0 0.0
    %1310 = vmatprep.subr.mxu0 0.0
    %1311 = vmatpush1.xpose.msra.mxu0 0.0
    %1312 = vmatprep.subr.mxu0 0.0
    %1313 = vmatpush1.xpose.msra.mxu0 0.0
    %1314 = vmatprep.subr.mxu0 0.0
    %1315 = vmatpush1.xpose.msra.mxu0 0.0
    %1316 = vmatprep.subr.mxu0 0.0
    %1317 = vmatpush1.xpose.msra.mxu0 0.0
    %1318 = vmatprep.subr.mxu0 0.0
    %1319 = vmatpush1.xpose.msra.mxu0 0.0
    %1320 = vmatprep.subr.mxu0 0.0
    %1321 = vmatpush1.xpose.msra.mxu0 0.0
    %1322 = vmatprep.subr.mxu0 0.0
    %1323 = vmatpush1.xpose.msra.mxu0 0.0
    %1324 = vmatprep.subr.mxu0 0.0
    %1325 = vmatpush1.xpose.msra.mxu0 0.0
    %1326 = vmatprep.subr.mxu0 0.0
    %1327 = vmatpush1.xpose.msra.mxu0 0.0
    %1328 = vmatprep.subr.mxu0 0.0
    %1329 = vmatpush1.xpose.msra.mxu0 0.0
    %1330 = vmatprep.subr.mxu0 0.0
    %1331 = vmatpush1.xpose.msra.mxu0 0.0
    %1332 = vmatprep.subr.mxu0 0.0
    %1333 = vmatpush1.xpose.msra.mxu0 0.0
    %1334 = vmatprep.subr.mxu0 0.0
    %1335 = vmatpush1.xpose.msra.mxu0 0.0
    %1336 = vmatprep.subr.mxu0 0.0
    %1337 = vmatpush1.xpose.msra.mxu0 0.0
    %1338 = vmatprep.subr.mxu0 0.0
    %1339 = vmatpush1.xpose.msra.mxu0 0.0
    %1340 = vmatprep.subr.mxu0 0.0
    %1341 = vmatpush1.xpose.msra.mxu0 0.0
    %1342 = vmatprep.subr.mxu0 0.0
    %1343 = vmatpush1.xpose.msra.mxu0 0.0
    %1344 = vmatprep.subr.mxu0 0.0
    %1345 = vmatpush1.xpose.msra.mxu0 0.0
    %1346 = vmatprep.subr.mxu0 0.0
    %1347 = vmatpush1.xpose.msra.mxu0 0.0
    %1348 = vmatprep.subr.mxu0 0.0
    %1349 = vmatpush1.xpose.msra.mxu0 0.0
    %1350 = vmatprep.subr.mxu0 0.0
    %1351 = vmatpush1.xpose.msra.mxu0 0.0
    %1352 = vmatprep.subr.mxu0 0.0
    %1353 = vmatpush1.xpose.msra.mxu0 0.0
    %1354 = vmatprep.subr.mxu0 0.0
    %1355 = vmatpush1.xpose.msra.mxu0 0.0
    %1356 = vmatprep.subr.mxu0 0.0
    %1357 = vmatpush1.xpose.msra.mxu0 0.0
    %1358 = vmatprep.subr.mxu0 0.0
    %1359 = vmatpush1.xpose.msra.mxu0 0.0
    %1360 = vmatprep.subr.mxu0 0.0
    %1361 = vmatpush1.xpose.msra.mxu0 0.0
    %1362 = vmatprep.subr.mxu0 0.0
    %1363 = vmatpush1.xpose.msra.mxu0 0.0
    %1364 = vmatprep.mubr.f32.mxu0 0.0
    %1365 = vmatmul.mubr.f32.gmra.mrb[0].mxu0 %v1296
    %v1366 = vpop.f32.mrb[0].mxu0
    %v1367 = vadd.f32 0.0, %v1366
    %v1368 = vpop.f32.mrb[0].mxu0
    %1369 = vdwg.mxu0
    %v1370 = vsel %vm248, %v1367, -inf
    %1371 = vmax.xlane.f32.xlu0 %v1370
    %v1372 = vpop.xlane.xlu0 %1371
    %v1373 = vsub.f32 %v1367, %v1372
    %v1374 = vmul.f32 %v1373, 1.442695
    %v1375 = vpow.pop %v1374
    %v1376 = vsel %vm248, %v1375, 0.0
    %1377 = vadd.xlane.f32.xlu0 %v1376
    %v1378 = vpop.xlane.xlu0 %1377
    %v1379 = vrcp.pop %v1378
    %v1380 = vmul.f32 %v1375, %v1379
    %1381 = vrot.lane.b32.xlu0 %v164, 48
    %v1382 = vpop.permute.xlu0 %1381
    %v1385 = vsel %vm248, %v1380, 0
    %1387 = vmatprep.subr.mxu0 0.0
    %1388 = vmatpush1.msra.mxu0 %v1382
    %1389 = vmatprep.subr.mxu0 0.0
    %1390 = vmatpush1.msra.mxu0 0.0
    %1391 = vmatprep.subr.mxu0 0.0
    %1392 = vmatpush1.msra.mxu0 0.0
    %1393 = vmatprep.subr.mxu0 0.0
    %1394 = vmatpush1.msra.mxu0 0.0
    %1395 = vmatprep.subr.mxu0 0.0
    %1396 = vmatpush1.msra.mxu0 0.0
    %1397 = vmatprep.subr.mxu0 0.0
    %1398 = vmatpush1.msra.mxu0 0.0
    %1399 = vmatprep.subr.mxu0 0.0
    %1400 = vmatpush1.msra.mxu0 0.0
    %1401 = vmatprep.subr.mxu0 0.0
    %1402 = vmatpush1.msra.mxu0 0.0
    %1403 = vmatprep.subr.mxu0 0.0
    %1404 = vmatpush1.msra.mxu0 0.0
    %1405 = vmatprep.subr.mxu0 0.0
    %1406 = vmatpush1.msra.mxu0 0.0
    %1407 = vmatprep.subr.mxu0 0.0
    %1408 = vmatpush1.msra.mxu0 0.0
    %1409 = vmatprep.subr.mxu0 0.0
    %1410 = vmatpush1.msra.mxu0 0.0
    %1411 = vmatprep.subr.mxu0 0.0
    %1412 = vmatpush1.msra.mxu0 0.0
    %1413 = vmatprep.subr.mxu0 0.0
    %1414 = vmatpush1.msra.mxu0 0.0
    %1415 = vmatprep.subr.mxu0 0.0
    %1416 = vmatpush1.msra.mxu0 0.0
    %1417 = vmatprep.subr.mxu0 0.0
    %1418 = vmatpush1.msra.mxu0 0.0
    %1419 = vmatprep.subr.mxu0 0.0
    %1420 = vmatpush1.msra.mxu0 0.0
    %1421 = vmatprep.subr.mxu0 0.0
    %1422 = vmatpush1.msra.mxu0 0.0
    %1423 = vmatprep.subr.mxu0 0.0
    %1424 = vmatpush1.msra.mxu0 0.0
    %1425 = vmatprep.subr.mxu0 0.0
    %1426 = vmatpush1.msra.mxu0 0.0
    %1427 = vmatprep.subr.mxu0 0.0
    %1428 = vmatpush1.msra.mxu0 0.0
    %1429 = vmatprep.subr.mxu0 0.0
    %1430 = vmatpush1.msra.mxu0 0.0
    %1431 = vmatprep.subr.mxu0 0.0
    %1432 = vmatpush1.msra.mxu0 0.0
    %1433 = vmatprep.subr.mxu0 0.0
    %1434 = vmatpush1.msra.mxu0 0.0
    %1435 = vmatprep.subr.mxu0 0.0
    %1436 = vmatpush1.msra.mxu0 0.0
    %1437 = vmatprep.subr.mxu0 0.0
    %1438 = vmatpush1.msra.mxu0 0.0
    %1439 = vmatprep.subr.mxu0 0.0
    %1440 = vmatpush1.msra.mxu0 0.0
    %1441 = vmatprep.subr.mxu0 0.0
    %1442 = vmatpush1.msra.mxu0 0.0
    %1443 = vmatprep.subr.mxu0 0.0
    %1444 = vmatpush1.msra.mxu0 0.0
    %1445 = vmatprep.subr.mxu0 0.0
    %1446 = vmatpush1.msra.mxu0 0.0
    %1447 = vmatprep.subr.mxu0 0.0
    %1448 = vmatpush1.msra.mxu0 0.0
    %1449 = vmatprep.subr.mxu0 0.0
    %1450 = vmatpush1.msra.mxu0 0.0
    %1451 = vmatprep.mubr.f32.mxu0 0.0
    %1452 = vmatmul.mubr.f32.gmra.mrb[0].mxu0 %v1385
    %v1453 = vpop.f32.mrb[0].mxu0
    %v1454 = vadd.f32 0.0, %v1453
    %v1455 = vpop.f32.mrb[0].mxu0
    %1456 = vdwg.mxu0
    %v1458 = vsel %vm172, %v1454, 0
    %1460 = vmatprep.subr.mxu0 0.0
    %1461 = vmatpush1.msra.mxu0 %v79
    %1462 = vmatprep.subr.mxu0 0.0
    %1463 = vmatpush1.msra.mxu0 %v80
    %1464 = vmatprep.subr.mxu0 0.0
    %1465 = vmatpush1.msra.mxu0 0.0
    %1466 = vmatprep.subr.mxu0 0.0
    %1467 = vmatpush1.msra.mxu0 0.0
    %1468 = vmatprep.subr.mxu0 0.0
    %1469 = vmatpush1.msra.mxu0 0.0
    %1470 = vmatprep.subr.mxu0 0.0
    %1471 = vmatpush1.msra.mxu0 0.0
    %1472 = vmatprep.subr.mxu0 0.0
    %1473 = vmatpush1.msra.mxu0 0.0
    %1474 = vmatprep.subr.mxu0 0.0
    %1475 = vmatpush1.msra.mxu0 0.0
    %1476 = vmatprep.subr.mxu0 0.0
    %1477 = vmatpush1.msra.mxu0 0.0
    %1478 = vmatprep.subr.mxu0 0.0
    %1479 = vmatpush1.msra.mxu0 0.0
    %1480 = vmatprep.subr.mxu0 0.0
    %1481 = vmatpush1.msra.mxu0 0.0
    %1482 = vmatprep.subr.mxu0 0.0
    %1483 = vmatpush1.msra.mxu0 0.0
    %1484 = vmatprep.subr.mxu0 0.0
    %1485 = vmatpush1.msra.mxu0 0.0
    %1486 = vmatprep.subr.mxu0 0.0
    %1487 = vmatpush1.msra.mxu0 0.0
    %1488 = vmatprep.subr.mxu0 0.0
    %1489 = vmatpush1.msra.mxu0 0.0
    %1490 = vmatprep.subr.mxu0 0.0
    %1491 = vmatpush1.msra.mxu0 0.0
    %1492 = vmatprep.subr.mxu0 0.0
    %1493 = vmatpush1.msra.mxu0 0.0
    %1494 = vmatprep.subr.mxu0 0.0
    %1495 = vmatpush1.msra.mxu0 0.0
    %1496 = vmatprep.subr.mxu0 0.0
    %1497 = vmatpush1.msra.mxu0 0.0
    %1498 = vmatprep.subr.mxu0 0.0
    %1499 = vmatpush1.msra.mxu0 0.0
    %1500 = vmatprep.subr.mxu0 0.0
    %1501 = vmatpush1.msra.mxu0 0.0
    %1502 = vmatprep.subr.mxu0 0.0
    %1503 = vmatpush1.msra.mxu0 0.0
    %1504 = vmatprep.subr.mxu0 0.0
    %1505 = vmatpush1.msra.mxu0 0.0
    %1506 = vmatprep.subr.mxu0 0.0
    %1507 = vmatpush1.msra.mxu0 0.0
    %1508 = vmatprep.subr.mxu0 0.0
    %1509 = vmatpush1.msra.mxu0 0.0
    %1510 = vmatprep.subr.mxu0 0.0
    %1511 = vmatpush1.msra.mxu0 0.0
    %1512 = vmatprep.subr.mxu0 0.0
    %1513 = vmatpush1.msra.mxu0 0.0
    %1514 = vmatprep.subr.mxu0 0.0
    %1515 = vmatpush1.msra.mxu0 0.0
    %1516 = vmatprep.subr.mxu0 0.0
    %1517 = vmatpush1.msra.mxu0 0.0
    %1518 = vmatprep.subr.mxu0 0.0
    %1519 = vmatpush1.msra.mxu0 0.0
    %1520 = vmatprep.subr.mxu0 0.0
    %1521 = vmatpush1.msra.mxu0 0.0
    %1522 = vmatprep.subr.mxu0 0.0
    %1523 = vmatpush1.msra.mxu0 0.0
    %1524 = vmatprep.mubr.f32.mxu0 0.0
    %1525 = vmatmul.mubr.f32.gmra.mrb[0].mxu0 %v1458
    %v1526 = vpop.f32.mrb[0].mxu0
    %v1527 = vadd.f32 0.0, %v1526
    %v1528 = vpop.f32.mrb[0].mxu0
    %1529 = vdwg.mxu0
    %v1531 = vsel %vm172, %v1289, 0
    %1533 = vmatprep.subr.mxu0 0.0
    %1534 = vmatpush1.msra.mxu0 %v77
    %1535 = vmatprep.subr.mxu0 0.0
    %1536 = vmatpush1.msra.mxu0 %v78
    %1537 = vmatprep.subr.mxu0 0.0
    %1538 = vmatpush1.msra.mxu0 0.0
    %1539 = vmatprep.subr.mxu0 0.0
    %1540 = vmatpush1.msra.mxu0 0.0
    %1541 = vmatprep.subr.mxu0 0.0
    %1542 = vmatpush1.msra.mxu0 0.0
    %1543 = vmatprep.subr.mxu0 0.0
    %1544 = vmatpush1.msra.mxu0 0.0
    %1545 = vmatprep.subr.mxu0 0.0
    %1546 = vmatpush1.msra.mxu0 0.0
    %1547 = vmatprep.subr.mxu0 0.0
    %1548 = vmatpush1.msra.mxu0 0.0
    %1549 = vmatprep.subr.mxu0 0.0
    %1550 = vmatpush1.msra.mxu0 0.0
    %1551 = vmatprep.subr.mxu0 0.0
    %1552 = vmatpush1.msra.mxu0 0.0
    %1553 = vmatprep.subr.mxu0 0.0
    %1554 = vmatpush1.msra.mxu0 0.0
    %1555 = vmatprep.subr.mxu0 0.0
    %1556 = vmatpush1.msra.mxu0 0.0
    %1557 = vmatprep.subr.mxu0 0.0
    %1558 = vmatpush1.msra.mxu0 0.0
    %1559 = vmatprep.subr.mxu0 0.0
    %1560 = vmatpush1.msra.mxu0 0.0
    %1561 = vmatprep.subr.mxu0 0.0
    %1562 = vmatpush1.msra.mxu0 0.0
    %1563 = vmatprep.subr.mxu0 0.0
    %1564 = vmatpush1.msra.mxu0 0.0
    %1565 = vmatprep.subr.mxu0 0.0
    %1566 = vmatpush1.msra.mxu0 0.0
    %1567 = vmatprep.subr.mxu0 0.0
    %1568 = vmatpush1.msra.mxu0 0.0
    %1569 = vmatprep.subr.mxu0 0.0
    %1570 = vmatpush1.msra.mxu0 0.0
    %1571 = vmatprep.subr.mxu0 0.0
    %1572 = vmatpush1.msra.mxu0 0.0
    %1573 = vmatprep.subr.mxu0 0.0
    %1574 = vmatpush1.msra.mxu0 0.0
    %1575 = vmatprep.subr.mxu0 0.0
    %1576 = vmatpush1.msra.mxu0 0.0
    %1577 = vmatprep.subr.mxu0 0.0
    %1578 = vmatpush1.msra.mxu0 0.0
    %1579 = vmatprep.subr.mxu0 0.0
    %1580 = vmatpush1.msra.mxu0 0.0
    %1581 = vmatprep.subr.mxu0 0.0
    %1582 = vmatpush1.msra.mxu0 0.0
    %1583 = vmatprep.subr.mxu0 0.0
    %1584 = vmatpush1.msra.mxu0 0.0
    %1585 = vmatprep.subr.mxu0 0.0
    %1586 = vmatpush1.msra.mxu0 0.0
    %1587 = vmatprep.subr.mxu0 0.0
    %1588 = vmatpush1.msra.mxu0 0.0
    %1589 = vmatprep.subr.mxu0 0.0
    %1590 = vmatpush1.msra.mxu0 0.0
    %1591 = vmatprep.subr.mxu0 0.0
    %1592 = vmatpush1.msra.mxu0 0.0
    %1593 = vmatprep.subr.mxu0 0.0
    %1594 = vmatpush1.msra.mxu0 0.0
    %1595 = vmatprep.subr.mxu0 0.0
    %1596 = vmatpush1.msra.mxu0 0.0
    %1597 = vmatprep.mubr.f32.mxu0 0.0
    %1598 = vmatmul.mubr.f32.gmra.mrb[0].mxu0 %v1531
    %v1599 = vpop.f32.mrb[0].mxu0
    %v1600 = vadd.f32 %v1527, %v1599
    %v1601 = vpop.f32.mrb[0].mxu0
    %1602 = vdwg.mxu0
    %1603 = vrot.lane.b32.xlu0 %v1126, 32
    %v1604 = vpop.permute.xlu0 %1603
    %1605 = vrot.lane.b32.xlu0 %v164, 16
    %v1606 = vpop.permute.xlu0 %1605
    %v1607 = vsel %vm172, %v1604, 0
    %v1609 = vsel %vm172, %v1606, 0
    %1611 = vmatprep.subr.mxu0 0.0
    %1612 = vmatpush1.xpose.msra.mxu0 %v1609
    %1613 = vmatprep.subr.mxu0 0.0
    %1614 = vmatpush1.xpose.msra.mxu0 0.0
    %1615 = vmatprep.subr.mxu0 0.0
    %1616 = vmatpush1.xpose.msra.mxu0 0.0
    %1617 = vmatprep.subr.mxu0 0.0
    %1618 = vmatpush1.xpose.msra.mxu0 0.0
    %1619 = vmatprep.subr.mxu0 0.0
    %1620 = vmatpush1.xpose.msra.mxu0 0.0
    %1621 = vmatprep.subr.mxu0 0.0
    %1622 = vmatpush1.xpose.msra.mxu0 0.0
    %1623 = vmatprep.subr.mxu0 0.0
    %1624 = vmatpush1.xpose.msra.mxu0 0.0
    %1625 = vmatprep.subr.mxu0 0.0
    %1626 = vmatpush1.xpose.msra.mxu0 0.0
    %1627 = vmatprep.subr.mxu0 0.0
    %1628 = vmatpush1.xpose.msra.mxu0 0.0
    %1629 = vmatprep.subr.mxu0 0.0
    %1630 = vmatpush1.xpose.msra.mxu0 0.0
    %1631 = vmatprep.subr.mxu0 0.0
    %1632 = vmatpush1.xpose.msra.mxu0 0.0
    %1633 = vmatprep.subr.mxu0 0.0
    %1634 = vmatpush1.xpose.msra.mxu0 0.0
    %1635 = vmatprep.subr.mxu0 0.0
    %1636 = vmatpush1.xpose.msra.mxu0 0.0
    %1637 = vmatprep.subr.mxu0 0.0
    %1638 = vmatpush1.xpose.msra.mxu0 0.0
    %1639 = vmatprep.subr.mxu0 0.0
    %1640 = vmatpush1.xpose.msra.mxu0 0.0
    %1641 = vmatprep.subr.mxu0 0.0
    %1642 = vmatpush1.xpose.msra.mxu0 0.0
    %1643 = vmatprep.subr.mxu0 0.0
    %1644 = vmatpush1.xpose.msra.mxu0 0.0
    %1645 = vmatprep.subr.mxu0 0.0
    %1646 = vmatpush1.xpose.msra.mxu0 0.0
    %1647 = vmatprep.subr.mxu0 0.0
    %1648 = vmatpush1.xpose.msra.mxu0 0.0
    %1649 = vmatprep.subr.mxu0 0.0
    %1650 = vmatpush1.xpose.msra.mxu0 0.0
    %1651 = vmatprep.subr.mxu0 0.0
    %1652 = vmatpush1.xpose.msra.mxu0 0.0
    %1653 = vmatprep.subr.mxu0 0.0
    %1654 = vmatpush1.xpose.msra.mxu0 0.0
    %1655 = vmatprep.subr.mxu0 0.0
    %1656 = vmatpush1.xpose.msra.mxu0 0.0
    %1657 = vmatprep.subr.mxu0 0.0
    %1658 = vmatpush1.xpose.msra.mxu0 0.0
    %1659 = vmatprep.subr.mxu0 0.0
    %1660 = vmatpush1.xpose.msra.mxu0 0.0
    %1661 = vmatprep.subr.mxu0 0.0
    %1662 = vmatpush1.xpose.msra.mxu0 0.0
    %1663 = vmatprep.subr.mxu0 0.0
    %1664 = vmatpush1.xpose.msra.mxu0 0.0
    %1665 = vmatprep.subr.mxu0 0.0
    %1666 = vmatpush1.xpose.msra.mxu0 0.0
    %1667 = vmatprep.subr.mxu0 0.0
    %1668 = vmatpush1.xpose.msra.mxu0 0.0
    %1669 = vmatprep.subr.mxu0 0.0
    %1670 = vmatpush1.xpose.msra.mxu0 0.0
    %1671 = vmatprep.subr.mxu0 0.0
    %1672 = vmatpush1.xpose.msra.mxu0 0.0
    %1673 = vmatprep.subr.mxu0 0.0
    %1674 = vmatpush1.xpose.msra.mxu0 0.0
    %1675 = vmatprep.mubr.f32.mxu0 0.0
    %1676 = vmatmul.mubr.f32.gmra.mrb[0].mxu0 %v1607
    %v1677 = vpop.f32.mrb[0].mxu0
    %v1678 = vadd.f32 0.0, %v1677
    %v1679 = vpop.f32.mrb[0].mxu0
    %1680 = vdwg.mxu0
    %v1681 = vsel %vm248, %v1678, -inf
    %1682 = vmax.xlane.f32.xlu0 %v1681
    %v1683 = vpop.xlane.xlu0 %1682
    %v1684 = vsub.f32 %v1678, %v1683
    %v1685 = vmul.f32 %v1684, 1.442695
    %v1686 = vpow.pop %v1685
    %v1687 = vsel %vm248, %v1686, 0.0
    %1688 = vadd.xlane.f32.xlu0 %v1687
    %v1689 = vpop.xlane.xlu0 %1688
    %v1690 = vrcp.pop %v1689
    %v1691 = vmul.f32 %v1686, %v1690
    %v1693 = vsel %vm248, %v1691, 0
    %1695 = vmatprep.subr.mxu0 0.0
    %1696 = vmatpush1.msra.mxu0 %v166
    %1697 = vmatprep.subr.mxu0 0.0
    %1698 = vmatpush1.msra.mxu0 0.0
    %1699 = vmatprep.subr.mxu0 0.0
    %1700 = vmatpush1.msra.mxu0 0.0
    %1701 = vmatprep.subr.mxu0 0.0
    %1702 = vmatpush1.msra.mxu0 0.0
    %1703 = vmatprep.subr.mxu0 0.0
    %1704 = vmatpush1.msra.mxu0 0.0
    %1705 = vmatprep.subr.mxu0 0.0
    %1706 = vmatpush1.msra.mxu0 0.0
    %1707 = vmatprep.subr.mxu0 0.0
    %1708 = vmatpush1.msra.mxu0 0.0
    %1709 = vmatprep.subr.mxu0 0.0
    %1710 = vmatpush1.msra.mxu0 0.0
    %1711 = vmatprep.subr.mxu0 0.0
    %1712 = vmatpush1.msra.mxu0 0.0
    %1713 = vmatprep.subr.mxu0 0.0
    %1714 = vmatpush1.msra.mxu0 0.0
    %1715 = vmatprep.subr.mxu0 0.0
    %1716 = vmatpush1.msra.mxu0 0.0
    %1717 = vmatprep.subr.mxu0 0.0
    %1718 = vmatpush1.msra.mxu0 0.0
    %1719 = vmatprep.subr.mxu0 0.0
    %1720 = vmatpush1.msra.mxu0 0.0
    %1721 = vmatprep.subr.mxu0 0.0
    %1722 = vmatpush1.msra.mxu0 0.0
    %1723 = vmatprep.subr.mxu0 0.0
    %1724 = vmatpush1.msra.mxu0 0.0
    %1725 = vmatprep.subr.mxu0 0.0
    %1726 = vmatpush1.msra.mxu0 0.0
    %1727 = vmatprep.subr.mxu0 0.0
    %1728 = vmatpush1.msra.mxu0 0.0
    %1729 = vmatprep.subr.mxu0 0.0
    %1730 = vmatpush1.msra.mxu0 0.0
    %1731 = vmatprep.subr.mxu0 0.0
    %1732 = vmatpush1.msra.mxu0 0.0
    %1733 = vmatprep.subr.mxu0 0.0
    %1734 = vmatpush1.msra.mxu0 0.0
    %1735 = vmatprep.subr.mxu0 0.0
    %1736 = vmatpush1.msra.mxu0 0.0
    %1737 = vmatprep.subr.mxu0 0.0
    %1738 = vmatpush1.msra.mxu0 0.0
    %1739 = vmatprep.subr.mxu0 0.0
    %1740 = vmatpush1.msra.mxu0 0.0
    %1741 = vmatprep.subr.mxu0 0.0
    %1742 = vmatpush1.msra.mxu0 0.0
    %1743 = vmatprep.subr.mxu0 0.0
    %1744 = vmatpush1.msra.mxu0 0.0
    %1745 = vmatprep.subr.mxu0 0.0
    %1746 = vmatpush1.msra.mxu0 0.0
    %1747 = vmatprep.subr.mxu0 0.0
    %1748 = vmatpush1.msra.mxu0 0.0
    %1749 = vmatprep.subr.mxu0 0.0
    %1750 = vmatpush1.msra.mxu0 0.0
    %1751 = vmatprep.subr.mxu0 0.0
    %1752 = vmatpush1.msra.mxu0 0.0
    %1753 = vmatprep.subr.mxu0 0.0
    %1754 = vmatpush1.msra.mxu0 0.0
    %1755 = vmatprep.subr.mxu0 0.0
    %1756 = vmatpush1.msra.mxu0 0.0
    %1757 = vmatprep.subr.mxu0 0.0
    %1758 = vmatpush1.msra.mxu0 0.0
    %1759 = vmatprep.mubr.f32.mxu0 0.0
    %1760 = vmatmul.mubr.f32.gmra.mrb[0].mxu0 %v1693
    %v1761 = vpop.f32.mrb[0].mxu0
    %v1762 = vadd.f32 0.0, %v1761
    %v1763 = vpop.f32.mrb[0].mxu0
    %1764 = vdwg.mxu0
    %v1766 = vsel %vm172, %v1762, 0
    %1768 = vmatprep.subr.mxu0 0.0
    %1769 = vmatpush1.msra.mxu0 %v81
    %1770 = vmatprep.subr.mxu0 0.0
    %1771 = vmatpush1.msra.mxu0 %v82
    %1772 = vmatprep.subr.mxu0 0.0
    %1773 = vmatpush1.msra.mxu0 0.0
    %1774 = vmatprep.subr.mxu0 0.0
    %1775 = vmatpush1.msra.mxu0 0.0
    %1776 = vmatprep.subr.mxu0 0.0
    %1777 = vmatpush1.msra.mxu0 0.0
    %1778 = vmatprep.subr.mxu0 0.0
    %1779 = vmatpush1.msra.mxu0 0.0
    %1780 = vmatprep.subr.mxu0 0.0
    %1781 = vmatpush1.msra.mxu0 0.0
    %1782 = vmatprep.subr.mxu0 0.0
    %1783 = vmatpush1.msra.mxu0 0.0
    %1784 = vmatprep.subr.mxu0 0.0
    %1785 = vmatpush1.msra.mxu0 0.0
    %1786 = vmatprep.subr.mxu0 0.0
    %1787 = vmatpush1.msra.mxu0 0.0
    %1788 = vmatprep.subr.mxu0 0.0
    %1789 = vmatpush1.msra.mxu0 0.0
    %1790 = vmatprep.subr.mxu0 0.0
    %1791 = vmatpush1.msra.mxu0 0.0
    %1792 = vmatprep.subr.mxu0 0.0
    %1793 = vmatpush1.msra.mxu0 0.0
    %1794 = vmatprep.subr.mxu0 0.0
    %1795 = vmatpush1.msra.mxu0 0.0
    %1796 = vmatprep.subr.mxu0 0.0
    %1797 = vmatpush1.msra.mxu0 0.0
    %1798 = vmatprep.subr.mxu0 0.0
    %1799 = vmatpush1.msra.mxu0 0.0
    %1800 = vmatprep.subr.mxu0 0.0
    %1801 = vmatpush1.msra.mxu0 0.0
    %1802 = vmatprep.subr.mxu0 0.0
    %1803 = vmatpush1.msra.mxu0 0.0
    %1804 = vmatprep.subr.mxu0 0.0
    %1805 = vmatpush1.msra.mxu0 0.0
    %1806 = vmatprep.subr.mxu0 0.0
    %1807 = vmatpush1.msra.mxu0 0.0
    %1808 = vmatprep.subr.mxu0 0.0
    %1809 = vmatpush1.msra.mxu0 0.0
    %1810 = vmatprep.subr.mxu0 0.0
    %1811 = vmatpush1.msra.mxu0 0.0
    %1812 = vmatprep.subr.mxu0 0.0
    %1813 = vmatpush1.msra.mxu0 0.0
    %1814 = vmatprep.subr.mxu0 0.0
    %1815 = vmatpush1.msra.mxu0 0.0
    %1816 = vmatprep.subr.mxu0 0.0
    %1817 = vmatpush1.msra.mxu0 0.0
    %1818 = vmatprep.subr.mxu0 0.0
    %1819 = vmatpush1.msra.mxu0 0.0
    %1820 = vmatprep.subr.mxu0 0.0
    %1821 = vmatpush1.msra.mxu0 0.0
    %1822 = vmatprep.subr.mxu0 0.0
    %1823 = vmatpush1.msra.mxu0 0.0
    %1824 = vmatprep.subr.mxu0 0.0
    %1825 = vmatpush1.msra.mxu0 0.0
    %1826 = vmatprep.subr.mxu0 0.0
    %1827 = vmatpush1.msra.mxu0 0.0
    %1828 = vmatprep.subr.mxu0 0.0
    %1829 = vmatpush1.msra.mxu0 0.0
    %1830 = vmatprep.subr.mxu0 0.0
    %1831 = vmatpush1.msra.mxu0 0.0
    %1832 = vmatprep.mubr.f32.mxu0 0.0
    %1833 = vmatmul.mubr.f32.gmra.mrb[0].mxu0 %v1766
    %v1834 = vpop.f32.mrb[0].mxu0
    %v1835 = vadd.f32 0.0, %v1834
    %v1836 = vpop.f32.mrb[0].mxu0
    %1837 = vdwg.mxu0
    %v1838 = vadd.f32 %v1600, %v1835
    %v1839 = vmul.f32 %v166, 0.25
    %1841 = vrot.lane.b32.xlu0 %v1839, 112
    %v1842 = vpop.permute.xlu0 %1841
    %1844 = vrot.lane.b32.xlu0 %v166, 96
    %v1845 = vpop.permute.xlu0 %1844
    %v1846 = vsel %vm172, %v1842, 0
    %v1848 = vsel %vm172, %v1845, 0
    %1850 = vmatprep.subr.mxu0 0.0
    %1851 = vmatpush1.xpose.msra.mxu0 %v1848
    %1852 = vmatprep.subr.mxu0 0.0
    %1853 = vmatpush1.xpose.msra.mxu0 0.0
    %1854 = vmatprep.subr.mxu0 0.0
    %1855 = vmatpush1.xpose.msra.mxu0 0.0
    %1856 = vmatprep.subr.mxu0 0.0
    %1857 = vmatpush1.xpose.msra.mxu0 0.0
    %1858 = vmatprep.subr.mxu0 0.0
    %1859 = vmatpush1.xpose.msra.mxu0 0.0
    %1860 = vmatprep.subr.mxu0 0.0
    %1861 = vmatpush1.xpose.msra.mxu0 0.0
    %1862 = vmatprep.subr.mxu0 0.0
    %1863 = vmatpush1.xpose.msra.mxu0 0.0
    %1864 = vmatprep.subr.mxu0 0.0
    %1865 = vmatpush1.xpose.msra.mxu0 0.0
    %1866 = vmatprep.subr.mxu0 0.0
    %1867 = vmatpush1.xpose.msra.mxu0 0.0
    %1868 = vmatprep.subr.mxu0 0.0
    %1869 = vmatpush1.xpose.msra.mxu0 0.0
    %1870 = vmatprep.subr.mxu0 0.0
    %1871 = vmatpush1.xpose.msra.mxu0 0.0
    %1872 = vmatprep.subr.mxu0 0.0
    %1873 = vmatpush1.xpose.msra.mxu0 0.0
    %1874 = vmatprep.subr.mxu0 0.0
    %1875 = vmatpush1.xpose.msra.mxu0 0.0
    %1876 = vmatprep.subr.mxu0 0.0
    %1877 = vmatpush1.xpose.msra.mxu0 0.0
    %1878 = vmatprep.subr.mxu0 0.0
    %1879 = vmatpush1.xpose.msra.mxu0 0.0
    %1880 = vmatprep.subr.mxu0 0.0
    %1881 = vmatpush1.xpose.msra.mxu0 0.0
    %1882 = vmatprep.subr.mxu0 0.0
    %1883 = vmatpush1.xpose.msra.mxu0 0.0
    %1884 = vmatprep.subr.mxu0 0.0
    %1885 = vmatpush1.xpose.msra.mxu0 0.0
    %1886 = vmatprep.subr.mxu0 0.0
    %1887 = vmatpush1.xpose.msra.mxu0 0.0
    %1888 = vmatprep.subr.mxu0 0.0
    %1889 = vmatpush1.xpose.msra.mxu0 0.0
    %1890 = vmatprep.subr.mxu0 0.0
    %1891 = vmatpush1.xpose.msra.mxu0 0.0
    %1892 = vmatprep.subr.mxu0 0.0
    %1893 = vmatpush1.xpose.msra.mxu0 0.0
    %1894 = vmatprep.subr.mxu0 0.0
    %1895 = vmatpush1.xpose.msra.mxu0 0.0
    %1896 = vmatprep.subr.mxu0 0.0
    %1897 = vmatpush1.xpose.msra.mxu0 0.0
    %1898 = vmatprep.subr.mxu0 0.0
    %1899 = vmatpush1.xpose.msra.mxu0 0.0
    %1900 = vmatprep.subr.mxu0 0.0
    %1901 = vmatpush1.xpose.msra.mxu0 0.0
    %1902 = vmatprep.subr.mxu0 0.0
    %1903 = vmatpush1.xpose.msra.mxu0 0.0
    %1904 = vmatprep.subr.mxu0 0.0
    %1905 = vmatpush1.xpose.msra.mxu0 0.0
    %1906 = vmatprep.subr.mxu0 0.0
    %1907 = vmatpush1.xpose.msra.mxu0 0.0
    %1908 = vmatprep.subr.mxu0 0.0
    %1909 = vmatpush1.xpose.msra.mxu0 0.0
    %1910 = vmatprep.subr.mxu0 0.0
    %1911 = vmatpush1.xpose.msra.mxu0 0.0
    %1912 = vmatprep.subr.mxu0 0.0
    %1913 = vmatpush1.xpose.msra.mxu0 0.0
    %1914 = vmatprep.mubr.f32.mxu0 0.0
    %1915 = vmatmul.mubr.f32.gmra.mrb[0].mxu0 %v1846
    %v1916 = vpop.f32.mrb[0].mxu0
    %v1917 = vadd.f32 0.0, %v1916
    %v1918 = vpop.f32.mrb[0].mxu0
    %1919 = vdwg.mxu0
    %v1920 = vsel %vm248, %v1917, -inf
    %1921 = vmax.xlane.f32.xlu0 %v1920
    %v1922 = vpop.xlane.xlu0 %1921
    %v1923 = vsub.f32 %v1917, %v1922
    %v1924 = vmul.f32 %v1923, 1.442695
    %v1925 = vpow.pop %v1924
    %v1926 = vsel %vm248, %v1925, 0.0
    %1927 = vadd.xlane.f32.xlu0 %v1926
    %v1928 = vpop.xlane.xlu0 %1927
    %v1929 = vrcp.pop %v1928
    %v1930 = vmul.f32 %v1925, %v1929
    %1931 = vrot.lane.b32.xlu0 %v166, 80
    %v1932 = vpop.permute.xlu0 %1931
    %v1935 = vsel %vm248, %v1930, 0
    %1937 = vmatprep.subr.mxu0 0.0
    %1938 = vmatpush1.msra.mxu0 %v1932
    %1939 = vmatprep.subr.mxu0 0.0
    %1940 = vmatpush1.msra.mxu0 0.0
    %1941 = vmatprep.subr.mxu0 0.0
    %1942 = vmatpush1.msra.mxu0 0.0
    %1943 = vmatprep.subr.mxu0 0.0
    %1944 = vmatpush1.msra.mxu0 0.0
    %1945 = vmatprep.subr.mxu0 0.0
    %1946 = vmatpush1.msra.mxu0 0.0
    %1947 = vmatprep.subr.mxu0 0.0
    %1948 = vmatpush1.msra.mxu0 0.0
    %1949 = vmatprep.subr.mxu0 0.0
    %1950 = vmatpush1.msra.mxu0 0.0
    %1951 = vmatprep.subr.mxu0 0.0
    %1952 = vmatpush1.msra.mxu0 0.0
    %1953 = vmatprep.subr.mxu0 0.0
    %1954 = vmatpush1.msra.mxu0 0.0
    %1955 = vmatprep.subr.mxu0 0.0
    %1956 = vmatpush1.msra.mxu0 0.0
    %1957 = vmatprep.subr.mxu0 0.0
    %1958 = vmatpush1.msra.mxu0 0.0
    %1959 = vmatprep.subr.mxu0 0.0
    %1960 = vmatpush1.msra.mxu0 0.0
    %1961 = vmatprep.subr.mxu0 0.0
    %1962 = vmatpush1.msra.mxu0 0.0
    %1963 = vmatprep.subr.mxu0 0.0
    %1964 = vmatpush1.msra.mxu0 0.0
    %1965 = vmatprep.subr.mxu0 0.0
    %1966 = vmatpush1.msra.mxu0 0.0
    %1967 = vmatprep.subr.mxu0 0.0
    %1968 = vmatpush1.msra.mxu0 0.0
    %1969 = vmatprep.subr.mxu0 0.0
    %1970 = vmatpush1.msra.mxu0 0.0
    %1971 = vmatprep.subr.mxu0 0.0
    %1972 = vmatpush1.msra.mxu0 0.0
    %1973 = vmatprep.subr.mxu0 0.0
    %1974 = vmatpush1.msra.mxu0 0.0
    %1975 = vmatprep.subr.mxu0 0.0
    %1976 = vmatpush1.msra.mxu0 0.0
    %1977 = vmatprep.subr.mxu0 0.0
    %1978 = vmatpush1.msra.mxu0 0.0
    %1979 = vmatprep.subr.mxu0 0.0
    %1980 = vmatpush1.msra.mxu0 0.0
    %1981 = vmatprep.subr.mxu0 0.0
    %1982 = vmatpush1.msra.mxu0 0.0
    %1983 = vmatprep.subr.mxu0 0.0
    %1984 = vmatpush1.msra.mxu0 0.0
    %1985 = vmatprep.subr.mxu0 0.0
    %1986 = vmatpush1.msra.mxu0 0.0
    %1987 = vmatprep.subr.mxu0 0.0
    %1988 = vmatpush1.msra.mxu0 0.0
    %1989 = vmatprep.subr.mxu0 0.0
    %1990 = vmatpush1.msra.mxu0 0.0
    %1991 = vmatprep.subr.mxu0 0.0
    %1992 = vmatpush1.msra.mxu0 0.0
    %1993 = vmatprep.subr.mxu0 0.0
    %1994 = vmatpush1.msra.mxu0 0.0
    %1995 = vmatprep.subr.mxu0 0.0
    %1996 = vmatpush1.msra.mxu0 0.0
    %1997 = vmatprep.subr.mxu0 0.0
    %1998 = vmatpush1.msra.mxu0 0.0
    %1999 = vmatprep.subr.mxu0 0.0
    %2000 = vmatpush1.msra.mxu0 0.0
    %2001 = vmatprep.mubr.f32.mxu0 0.0
    %2002 = vmatmul.mubr.f32.gmra.mrb[0].mxu0 %v1935
    %v2003 = vpop.f32.mrb[0].mxu0
    %v2004 = vadd.f32 0.0, %v2003
    %v2005 = vpop.f32.mrb[0].mxu0
    %2006 = vdwg.mxu0
    %v2008 = vsel %vm172, %v2004, 0
    %2010 = vmatprep.subr.mxu0 0.0
    %2011 = vmatpush1.msra.mxu0 %v83
    %2012 = vmatprep.subr.mxu0 0.0
    %2013 = vmatpush1.msra.mxu0 %v84
    %2014 = vmatprep.subr.mxu0 0.0
    %2015 = vmatpush1.msra.mxu0 0.0
    %2016 = vmatprep.subr.mxu0 0.0
    %2017 = vmatpush1.msra.mxu0 0.0
    %2018 = vmatprep.subr.mxu0 0.0
    %2019 = vmatpush1.msra.mxu0 0.0
    %2020 = vmatprep.subr.mxu0 0.0
    %2021 = vmatpush1.msra.mxu0 0.0
    %2022 = vmatprep.subr.mxu0 0.0
    %2023 = vmatpush1.msra.mxu0 0.0
    %2024 = vmatprep.subr.mxu0 0.0
    %2025 = vmatpush1.msra.mxu0 0.0
    %2026 = vmatprep.subr.mxu0 0.0
    %2027 = vmatpush1.msra.mxu0 0.0
    %2028 = vmatprep.subr.mxu0 0.0
    %2029 = vmatpush1.msra.mxu0 0.0
    %2030 = vmatprep.subr.mxu0 0.0
    %2031 = vmatpush1.msra.mxu0 0.0
    %2032 = vmatprep.subr.mxu0 0.0
    %2033 = vmatpush1.msra.mxu0 0.0
    %2034 = vmatprep.subr.mxu0 0.0
    %2035 = vmatpush1.msra.mxu0 0.0
    %2036 = vmatprep.subr.mxu0 0.0
    %2037 = vmatpush1.msra.mxu0 0.0
    %2038 = vmatprep.subr.mxu0 0.0
    %2039 = vmatpush1.msra.mxu0 0.0
    %2040 = vmatprep.subr.mxu0 0.0
    %2041 = vmatpush1.msra.mxu0 0.0
    %2042 = vmatprep.subr.mxu0 0.0
    %2043 = vmatpush1.msra.mxu0 0.0
    %2044 = vmatprep.subr.mxu0 0.0
    %2045 = vmatpush1.msra.mxu0 0.0
    %2046 = vmatprep.subr.mxu0 0.0
    %2047 = vmatpush1.msra.mxu0 0.0
    %2048 = vmatprep.subr.mxu0 0.0
    %2049 = vmatpush1.msra.mxu0 0.0
    %2050 = vmatprep.subr.mxu0 0.0
    %2051 = vmatpush1.msra.mxu0 0.0
    %2052 = vmatprep.subr.mxu0 0.0
    %2053 = vmatpush1.msra.mxu0 0.0
    %2054 = vmatprep.subr.mxu0 0.0
    %2055 = vmatpush1.msra.mxu0 0.0
    %2056 = vmatprep.subr.mxu0 0.0
    %2057 = vmatpush1.msra.mxu0 0.0
    %2058 = vmatprep.subr.mxu0 0.0
    %2059 = vmatpush1.msra.mxu0 0.0
    %2060 = vmatprep.subr.mxu0 0.0
    %2061 = vmatpush1.msra.mxu0 0.0
    %2062 = vmatprep.subr.mxu0 0.0
    %2063 = vmatpush1.msra.mxu0 0.0
    %2064 = vmatprep.subr.mxu0 0.0
    %2065 = vmatpush1.msra.mxu0 0.0
    %2066 = vmatprep.subr.mxu0 0.0
    %2067 = vmatpush1.msra.mxu0 0.0
    %2068 = vmatprep.subr.mxu0 0.0
    %2069 = vmatpush1.msra.mxu0 0.0
    %2070 = vmatprep.subr.mxu0 0.0
    %2071 = vmatpush1.msra.mxu0 0.0
    %2072 = vmatprep.subr.mxu0 0.0
    %2073 = vmatpush1.msra.mxu0 0.0
    %2074 = vmatprep.mubr.f32.mxu0 0.0
    %2075 = vmatmul.mubr.f32.gmra.mrb[0].mxu0 %v2008
    %v2076 = vpop.f32.mrb[0].mxu0
    %v2077 = vadd.f32 0.0, %v2076
    %v2078 = vpop.f32.mrb[0].mxu0
    %2079 = vdwg.mxu0
    %v2080 = vadd.f32 %v1838, %v2077
    %2081 = vst.msk [vmem:[#allocation2 + $0x8] sm:$0xff] %vm23, %v2080
    // Predicated region
    $region22: #{tpu_custom_call.1} parent=1 // pred_check
      _
    $region23: #{tpu_custom_call.1} parent=1 // pred_check_branch
      %2083 = sbr.rel (0) target = $region25
    $region24: #{tpu_custom_call.1} parent=1 // pred_region
      %s2085 = ssub.s32 256, 256
      %2086 = vsyncadd [#allocation3], %s2085
      %s2087 = sshll.u32 [#allocation2], 4
      %s2088 = int_to_ptr.vmem [resolvable:$true] %s2087
      %2093 = dma.vmem_to_hbm [thread:$0]  %s2088, 256, %s5, [#allocation3], 128, 128, 8
    $region25: #{tpu_custom_call.1} parent=1 // pred_fallthru
      _
    // Predicated region
    $region26: #{tpu_custom_call.1} parent=1 // pred_check
      _
    $region27: #{tpu_custom_call.1} parent=1 // pred_check_branch
      %2095 = sbr.rel (0) target = $region29
    $region28: #{tpu_custom_call.1} parent=1 // pred_region
      %2096 = dma.done [#allocation3], 256
    $region29: #{tpu_custom_call.1} parent=1 // pred_fallthru
      _
    %2097 = vsyncpa [#allocation3], 1

</llo_original>
